<compile_context>
chip_gen: v6e
topology: v6e:2x2x1
jax: 0.10.0
libtpu: 0.0.40
codegen_flags: <defaults>
</compile_context>

<pallas_src>
import functools

import jax
import jax.numpy as jnp
from jax.experimental import pallas as pl
from jax.experimental.pallas import tpu as pltpu


def mlp_kernel(xT_ref,
               w1T_ref,
               w2T_ref, b2_ref,
               w3T_ref, b3_ref,
               w4T_ref, b4_ref,
               oT_ref):
    # Feature-major layout: shapes are (features, TM); batch is the lane axis.
    xT = xT_ref[...]                                                   # (8, TM) f32, row 3 == 1.0

    # fc1 (+bias folded in as column 3 of w1T): K=8 f32 MXU pass.
    h = jnp.dot(w1T_ref[...], xT, preferred_element_type=jnp.float32)  # (512, TM) f32
    h = jnp.maximum(h, 0.0).astype(jnp.bfloat16)                       # fused ReLU + bf16 cast

    # fc2: (128,512) x (512,TM) bf16 MXU, f32 accumulate, f32 bias/ReLU.
    h = jnp.dot(w2T_ref[...], h, preferred_element_type=jnp.float32) + b2_ref[...]
    h = jnp.maximum(h, 0.0).astype(jnp.bfloat16)                       # (128, TM)

    # fc3 (output features zero-padded 64 -> 128): (128,128) x (128,TM) bf16 MXU.
    h = jnp.dot(w3T_ref[...], h, preferred_element_type=jnp.float32) + b3_ref[...]
    h = jnp.maximum(h, 0.0)                                            # (128, TM) f32

    # fc4 regression head (rows padded 2 -> 8, K padded 64 -> 128 with zeros): f32 MXU.
    out = jnp.dot(w4T_ref[...], h, preferred_element_type=jnp.float32) + b4_ref[...]
    oT_ref[...] = out                                                  # (8, TM) f32, lane-dense store


def _round_up(n, m):
    return ((n + m - 1) // m) * m


def prepare_params(params):
    """One-time device-side weight prep (transpose / pad / cast), hoisted off the hot path."""
    # fc1: fold bias into the matmul. K padded 3 -> 8: column 3 = b1, columns 4..7 = 0. f32.
    w1T = jnp.concatenate(
        [params["w1"].T,                                   # (512, 3)
         params["b1"].reshape(512, 1),                     # bias column (pairs with ones-row of x)
         jnp.zeros((512, 4), jnp.float32)], axis=1)        # (512, 8)

    w2T = params["w2"].T.astype(jnp.bfloat16)              # (128, 512) bf16
    b2 = params["b2"].reshape(128, 1)                      # (128, 1)   f32

    # fc3: pad output features 64 -> 128 (ReLU(0)=0, numerically identical).
    w3T = jnp.pad(params["w3"].T, ((0, 64), (0, 0))).astype(jnp.bfloat16)   # (128, 128) bf16
    b3 = jnp.pad(params["b3"].reshape(64, 1), ((0, 64), (0, 0)))            # (128, 1)   f32

    # fc4: pad rows 2 -> 8 (sublane-aligned, unmasked stores) and K 64 -> 128 with zeros. f32.
    w4T = jnp.pad(params["w4"].T, ((0, 6), (0, 64)))       # (8, 128) f32
    b4 = jnp.pad(params["b4"].reshape(2, 1), ((0, 6), (0, 0)))              # (8, 1)   f32

    return dict(w1T=w1T, w2T=w2T, b2=b2, w3T=w3T, b3=b3, w4T=w4T, b4=b4)


@functools.partial(jax.jit, static_argnames=("tm",))
def sound_source_model(x, prepared, *, tm=2048):
    """x: [B, 3] float32, prepared: output of prepare_params().  Returns [B, 2] float32."""
    B = x.shape[0]

    # Batch tile on the lane axis (multiple of 128).  For B > 128 cap the tile at
    # ceil(B/2) so the grid has >= 2 steps and both v7x TensorCores get work.
    target = B if B <= 128 else -(-B // 2)
    tm_eff = max(128, min(_round_up(tm, 128), _round_up(target, 128)))
    grid = -(-B // tm_eff)
    padded_B = grid * tm_eff

    # Feature-major input, explicitly zero/one-filled in HBM: rows 0..2 = x^T,
    # row 3 = 1.0 (bias row), rows 4..7 = 0, padded batch columns = 0.
    # (BlockSpec padding alone would leave stale VMEM in the extra K rows.)
    xT = jnp.zeros((8, padded_B), jnp.float32)
    xT = xT.at[:3, :B].set(x.T)
    xT = xT.at[3, :B].set(1.0)

    const = lambda i: (0, 0)   # weights/biases: same block every step -> stay VMEM-resident

    outT = pl.pallas_call(
        mlp_kernel,
        out_shape=jax.ShapeDtypeStruct((8, padded_B), jnp.float32),
        grid=(grid,),
        in_specs=[
            pl.BlockSpec((8, tm_eff), lambda i: (0, i)),          # x^T batch tile
            pl.BlockSpec((512, 8), const),                        # w1^T (bias folded in)
            pl.BlockSpec((128, 512), const), pl.BlockSpec((128, 1), const),
            pl.BlockSpec((128, 128), const), pl.BlockSpec((128, 1), const),
            pl.BlockSpec((8, 128), const),   pl.BlockSpec((8, 1), const),
        ],
        out_specs=pl.BlockSpec((8, tm_eff), lambda i: (0, i)),
        compiler_params=pltpu.CompilerParams(
            dimension_semantics=("parallel",),   # megacore sharding on v7x; no-op on v5e/v6e
            vmem_limit_bytes=32 << 20,           # explicit limit (v5e default is only 16 MiB)
        ),
    )(xT, prepared["w1T"], prepared["w2T"], prepared["b2"],
      prepared["w3T"], prepared["b3"], prepared["w4T"], prepared["b4"])

    return outT[:2, :B].T


def init_params(key):
    """Deterministic init matching the nn.Linear shapes (stored as [in, out])."""
    dims = [3, 512, 128, 64, 2]
    params = {}
    keys = jax.random.split(key, 2 * (len(dims) - 1))
    for i in range(len(dims) - 1):
        fan_in, fan_out = dims[i], dims[i + 1]
        bound = 1.0 / jnp.sqrt(fan_in)
        params[f"w{i + 1}"] = jax.random.uniform(
            keys[2 * i], (fan_in, fan_out), jnp.float32, -bound, bound)
        params[f"b{i + 1}"] = jax.random.uniform(
            keys[2 * i + 1], (1, fan_out), jnp.float32, -bound, bound)
    return params


def reference(x, params):
    h = jnp.maximum(x @ params["w1"] + params["b1"], 0.0)
    h = jnp.maximum(h @ params["w2"] + params["b2"], 0.0)
    h = jnp.maximum(h @ params["w3"] + params["b3"], 0.0)
    return h @ params["w4"] + params["b4"]


if __name__ == "__main__":
    key = jax.random.PRNGKey(0)
    pkey, xkey, xkey2 = jax.random.split(key, 3)

    params = init_params(pkey)
    prepared = jax.tree_util.tree_map(jax.block_until_ready, prepare_params(params))

    # Small batch (latency path, single grid step).
    x = jax.random.normal(xkey, (8, 3), jnp.float32)
    out = jax.block_until_ready(sound_source_model(x, prepared))
    ref = reference(x, params)
    assert out.shape == (8, 2)
    # bf16 MXU operands on fc2/fc3 => loosened tolerance vs f32 reference.
    assert jnp.allclose(out, ref, atol=5e-2, rtol=5e-2)

    # Ragged batch (exercises padding + a 2-step batch grid).
    x2 = jax.random.normal(xkey2, (300, 3), jnp.float32)
    out2 = jax.block_until_ready(sound_source_model(x2, prepared, tm=512))
    ref2 = reference(x2, params)
    assert out2.shape == (300, 2)
    assert jnp.allclose(out2, ref2, atol=5e-2, rtol=5e-2)

    print("KERNEL_OK")
</pallas_src>

<mosaic_0001>
module attributes {stable_mosaic.version = 11 : i64} {
  func.func @mlp_kernel(%arg0: i32, %arg1: memref<8x128xf32, #tpu.memory_space<vmem>>, %arg2: memref<512x8xf32, #tpu.memory_space<vmem>>, %arg3: memref<128x512xbf16, #tpu.memory_space<vmem>>, %arg4: memref<128x1xf32, #tpu.memory_space<vmem>>, %arg5: memref<128x128xbf16, #tpu.memory_space<vmem>>, %arg6: memref<128x1xf32, #tpu.memory_space<vmem>>, %arg7: memref<8x128xf32, #tpu.memory_space<vmem>>, %arg8: memref<8x1xf32, #tpu.memory_space<vmem>>, %arg9: memref<8x128xf32, #tpu.memory_space<vmem>>) attributes {dimension_semantics = [#tpu.dimension_semantics<parallel>], iteration_bounds = array<i64: 1>, scalar_prefetch = 0 : i64, scratch_operands = 0 : i64, tpu.core_type = #tpu.core_type<tc>, window_params = [{transform_indices = @transform_0, window_bounds = array<i64: 8, 128>}, {pipeline_mode = #tpu.pipeline_mode<synchronous>, transform_indices = @transform_1, window_bounds = array<i64: 512, 8>}, {pipeline_mode = #tpu.pipeline_mode<synchronous>, transform_indices = @transform_2, window_bounds = array<i64: 128, 512>}, {pipeline_mode = #tpu.pipeline_mode<synchronous>, transform_indices = @transform_3, window_bounds = array<i64: 128, 1>}, {pipeline_mode = #tpu.pipeline_mode<synchronous>, transform_indices = @transform_4, window_bounds = array<i64: 128, 128>}, {pipeline_mode = #tpu.pipeline_mode<synchronous>, transform_indices = @transform_5, window_bounds = array<i64: 128, 1>}, {pipeline_mode = #tpu.pipeline_mode<synchronous>, transform_indices = @transform_6, window_bounds = array<i64: 8, 128>}, {pipeline_mode = #tpu.pipeline_mode<synchronous>, transform_indices = @transform_7, window_bounds = array<i64: 8, 1>}, {transform_indices = @transform_8, window_bounds = array<i64: 8, 128>}]} {
    %c0 = arith.constant 0 : index
    %c0_0 = arith.constant 0 : index
    %0 = vector.load %arg1[%c0, %c0_0] : memref<8x128xf32, #tpu.memory_space<vmem>>, vector<8x128xf32>
    %c0_1 = arith.constant 0 : index
    %c0_2 = arith.constant 0 : index
    %1 = vector.load %arg2[%c0_1, %c0_2] : memref<512x8xf32, #tpu.memory_space<vmem>>, vector<512x8xf32>
    %cst = arith.constant dense<0.000000e+00> : vector<512x128xf32>
    %2 = tpu.matmul %1, %0, %cst {dimension_numbers = #tpu.dot_dimension_numbers<[1], [0], [0], [1], [0, 0, 1, 1], [], []>} : vector<512x8xf32>, vector<8x128xf32>, vector<512x128xf32> -> vector<512x128xf32>
    %cst_3 = arith.constant 0.000000e+00 : f32
    %3 = vector.broadcast %cst_3 : f32 to vector<512x128xf32>
    %4 = arith.maximumf %2, %3 : vector<512x128xf32>
    %5 = arith.truncf %4 : vector<512x128xf32> to vector<512x128xbf16>
    %c0_4 = arith.constant 0 : index
    %c0_5 = arith.constant 0 : index
    %6 = vector.load %arg3[%c0_4, %c0_5] : memref<128x512xbf16, #tpu.memory_space<vmem>>, vector<128x512xbf16>
    %cst_6 = arith.constant dense<0.000000e+00> : vector<128x128xf32>
    %7 = tpu.matmul %6, %5, %cst_6 {dimension_numbers = #tpu.dot_dimension_numbers<[1], [0], [0], [1], [0, 0, 1, 1], [], []>} : vector<128x512xbf16>, vector<512x128xbf16>, vector<128x128xf32> -> vector<128x128xf32>
    %c0_7 = arith.constant 0 : index
    %c0_8 = arith.constant 0 : index
    %8 = vector.load %arg4[%c0_7, %c0_8] : memref<128x1xf32, #tpu.memory_space<vmem>>, vector<128x1xf32>
    %9 = vector.broadcast %8 : vector<128x1xf32> to vector<128x128xf32>
    %10 = arith.addf %7, %9 : vector<128x128xf32>
    %cst_9 = arith.constant 0.000000e+00 : f32
    %11 = vector.broadcast %cst_9 : f32 to vector<128x128xf32>
    %12 = arith.maximumf %10, %11 : vector<128x128xf32>
    %13 = arith.truncf %12 : vector<128x128xf32> to vector<128x128xbf16>
    %c0_10 = arith.constant 0 : index
    %c0_11 = arith.constant 0 : index
    %14 = vector.load %arg5[%c0_10, %c0_11] : memref<128x128xbf16, #tpu.memory_space<vmem>>, vector<128x128xbf16>
    %cst_12 = arith.constant dense<0.000000e+00> : vector<128x128xf32>
    %15 = tpu.matmul %14, %13, %cst_12 {dimension_numbers = #tpu.dot_dimension_numbers<[1], [0], [0], [1], [0, 0, 1, 1], [], []>} : vector<128x128xbf16>, vector<128x128xbf16>, vector<128x128xf32> -> vector<128x128xf32>
    %c0_13 = arith.constant 0 : index
    %c0_14 = arith.constant 0 : index
    %16 = vector.load %arg6[%c0_13, %c0_14] : memref<128x1xf32, #tpu.memory_space<vmem>>, vector<128x1xf32>
    %17 = vector.broadcast %16 : vector<128x1xf32> to vector<128x128xf32>
    %18 = arith.addf %15, %17 : vector<128x128xf32>
    %cst_15 = arith.constant 0.000000e+00 : f32
    %19 = vector.broadcast %cst_15 : f32 to vector<128x128xf32>
    %20 = arith.maximumf %18, %19 : vector<128x128xf32>
    %c0_16 = arith.constant 0 : index
    %c0_17 = arith.constant 0 : index
    %21 = vector.load %arg7[%c0_16, %c0_17] : memref<8x128xf32, #tpu.memory_space<vmem>>, vector<8x128xf32>
    %cst_18 = arith.constant dense<0.000000e+00> : vector<8x128xf32>
    %22 = tpu.matmul %21, %20, %cst_18 {dimension_numbers = #tpu.dot_dimension_numbers<[1], [0], [0], [1], [0, 0, 1, 1], [], []>} : vector<8x128xf32>, vector<128x128xf32>, vector<8x128xf32> -> vector<8x128xf32>
    %c0_19 = arith.constant 0 : index
    %c0_20 = arith.constant 0 : index
    %23 = vector.load %arg8[%c0_19, %c0_20] : memref<8x1xf32, #tpu.memory_space<vmem>>, vector<8x1xf32>
    %24 = vector.broadcast %23 : vector<8x1xf32> to vector<8x128xf32>
    %25 = arith.addf %22, %24 : vector<8x128xf32>
    %c0_21 = arith.constant 0 : index
    %c0_22 = arith.constant 0 : index
    %26 = vector.load %arg9[%c0_21, %c0_22] : memref<8x128xf32, #tpu.memory_space<vmem>>, vector<8x128xf32>
    tpu.vector_store %arg9[%c0_21, %c0_22], %25 {strides = array<i32>} : memref<8x128xf32, #tpu.memory_space<vmem>>, vector<8x128xf32>,
    return
  }
  func.func @transform_0(%arg0: i32) -> (i32, i32) {
    %c0_i32 = arith.constant 0 : i32
    %c0_i32_0 = arith.constant 0 : i32
    return %c0_i32, %arg0 : i32, i32
  }
  func.func @transform_1(%arg0: i32) -> (i32, i32) {
    %c0_i32 = arith.constant 0 : i32
    %c0_i32_0 = arith.constant 0 : i32
    %c0_i32_1 = arith.constant 0 : i32
    return %c0_i32, %c0_i32_0 : i32, i32
  }
  func.func @transform_2(%arg0: i32) -> (i32, i32) {
    %c0_i32 = arith.constant 0 : i32
    %c0_i32_0 = arith.constant 0 : i32
    %c0_i32_1 = arith.constant 0 : i32
    return %c0_i32, %c0_i32_0 : i32, i32
  }
  func.func @transform_3(%arg0: i32) -> (i32, i32) {
    %c0_i32 = arith.constant 0 : i32
    %c0_i32_0 = arith.constant 0 : i32
    %c0_i32_1 = arith.constant 0 : i32
    return %c0_i32, %c0_i32_0 : i32, i32
  }
  func.func @transform_4(%arg0: i32) -> (i32, i32) {
    %c0_i32 = arith.constant 0 : i32
    %c0_i32_0 = arith.constant 0 : i32
    %c0_i32_1 = arith.constant 0 : i32
    return %c0_i32, %c0_i32_0 : i32, i32
  }
  func.func @transform_5(%arg0: i32) -> (i32, i32) {
    %c0_i32 = arith.constant 0 : i32
    %c0_i32_0 = arith.constant 0 : i32
    %c0_i32_1 = arith.constant 0 : i32
    return %c0_i32, %c0_i32_0 : i32, i32
  }
  func.func @transform_6(%arg0: i32) -> (i32, i32) {
    %c0_i32 = arith.constant 0 : i32
    %c0_i32_0 = arith.constant 0 : i32
    %c0_i32_1 = arith.constant 0 : i32
    return %c0_i32, %c0_i32_0 : i32, i32
  }
  func.func @transform_7(%arg0: i32) -> (i32, i32) {
    %c0_i32 = arith.constant 0 : i32
    %c0_i32_0 = arith.constant 0 : i32
    %c0_i32_1 = arith.constant 0 : i32
    return %c0_i32, %c0_i32_0 : i32, i32
  }
  func.func @transform_8(%arg0: i32) -> (i32, i32) {
    %c0_i32 = arith.constant 0 : i32
    %c0_i32_0 = arith.constant 0 : i32
    return %c0_i32, %arg0 : i32, i32
  }
}

</mosaic_0001>

<llo_original>
// kernel: sound_source_model.1
$region0: #{sound_source_model.1}
  #allocation0 [shape = 'u32[]', space=smem, size = 0x4, offset = 0x4, fixed_abs, tag = 'smem constant byte address 0x4 - core index']
  #allocation1 [shape = 'u32[144,128]{1,0:T(1,128)}', space=vmem, size = 0x12000, scoped, tag = 'internal scratch']
  %s0 = inlined_call_operand.vmem [shape: f32[8,128], index: 0, kind: input, shape index: {}]
  %s1 = inlined_call_operand.vmem [shape: f32[512,8], index: 1, kind: input, shape index: {}]
  %s2 = inlined_call_operand.vmem [shape: bf16[128,512], index: 2, kind: input, shape index: {}]
  %s3 = inlined_call_operand.vmem [shape: f32[128,1], index: 3, kind: input, shape index: {}]
  %s4 = inlined_call_operand.vmem [shape: bf16[128,128], index: 4, kind: input, shape index: {}]
  %s5 = inlined_call_operand.vmem [shape: f32[128,1], index: 5, kind: input, shape index: {}]
  %s6 = inlined_call_operand.vmem [shape: f32[8,128], index: 6, kind: input, shape index: {}]
  %s7 = inlined_call_operand.vmem [shape: f32[8,1], index: 7, kind: input, shape index: {}]
  %s8 = inlined_call_operand.vmem [shape: f32[8,128], index: 8, kind: output, shape index: {}]
  %s9 = sld [smem:[#allocation0]]
  $region42: #{sound_source_model.1} parent=0
    _
  %s11 = ssub.s32 1, %s9
  %s12 = scalar_select 0, %s11, %s9
  // Predicated region
  $region2: #{sound_source_model.1} parent=0 // pred_check
    _
  $region3: #{sound_source_model.1} parent=0 // pred_check_branch
    %14 = sbr.rel (0) target = $region5
  $region4: #{sound_source_model.1} parent=0 // pred_region
    _
  $region5: #{sound_source_model.1} parent=0 // pred_fallthru
    _
  // Predicated region
  $region6: #{sound_source_model.1} parent=0 // pred_check
    _
  $region7: #{sound_source_model.1} parent=0 // pred_check_branch
    %16 = sbr.rel (0) target = $region9
  $region8: #{sound_source_model.1} parent=0 // pred_region
    _
  $region9: #{sound_source_model.1} parent=0 // pred_fallthru
    _
  // Predicated region
  $region10: #{sound_source_model.1} parent=0 // pred_check
    _
  $region11: #{sound_source_model.1} parent=0 // pred_check_branch
    %18 = sbr.rel (0) target = $region13
  $region12: #{sound_source_model.1} parent=0 // pred_region
    _
  $region13: #{sound_source_model.1} parent=0 // pred_fallthru
    _
  // Predicated region
  $region14: #{sound_source_model.1} parent=0 // pred_check
    _
  $region15: #{sound_source_model.1} parent=0 // pred_check_branch
    %20 = sbr.rel (0) target = $region17
  $region16: #{sound_source_model.1} parent=0 // pred_region
    _
  $region17: #{sound_source_model.1} parent=0 // pred_fallthru
    _
  // Predicated region
  $region18: #{sound_source_model.1} parent=0 // pred_check
    _
  $region19: #{sound_source_model.1} parent=0 // pred_check_branch
    %22 = sbr.rel (0) target = $region21
  $region20: #{sound_source_model.1} parent=0 // pred_region
    _
  $region21: #{sound_source_model.1} parent=0 // pred_fallthru
    _
  // Predicated region
  $region22: #{sound_source_model.1} parent=0 // pred_check
    _
  $region23: #{sound_source_model.1} parent=0 // pred_check_branch
    %24 = sbr.rel (0) target = $region25
  $region24: #{sound_source_model.1} parent=0 // pred_region
    _
  $region25: #{sound_source_model.1} parent=0 // pred_fallthru
    _
  // Predicated region
  $region26: #{sound_source_model.1} parent=0 // pred_check
    _
  $region27: #{sound_source_model.1} parent=0 // pred_check_branch
    %26 = sbr.rel (0) target = $region29
  $region28: #{sound_source_model.1} parent=0 // pred_region
    _
  $region29: #{sound_source_model.1} parent=0 // pred_fallthru
    _
  // Predicated region
  $region30: #{sound_source_model.1} parent=0 // pred_check
    _
  $region31: #{sound_source_model.1} parent=0 // pred_check_branch
    %28 = sbr.rel (0) target = $region33
  $region32: #{sound_source_model.1} parent=0 // pred_region
    _
  $region33: #{sound_source_model.1} parent=0 // pred_fallthru
    _
  %v30 = vld [vmem:[%s0] sm:$0xff]
  %v31 = vld [vmem:[%s1] sm:$0xff]
  %v32 = vld [vmem:[%s1 + $0x8] sm:$0xff]
  %v33 = vld [vmem:[%s1 + $0x10] sm:$0xff]
  %v34 = vld [vmem:[%s1 + $0x18] sm:$0xff]
  %v35 = vld [vmem:[%s1 + $0x20] sm:$0xff]
  %v36 = vld [vmem:[%s1 + $0x28] sm:$0xff]
  %v37 = vld [vmem:[%s1 + $0x30] sm:$0xff]
  %v38 = vld [vmem:[%s1 + $0x38] sm:$0xff]
  %v39 = vld [vmem:[%s1 + $0x40] sm:$0xff]
  %v40 = vld [vmem:[%s1 + $0x48] sm:$0xff]
  %v41 = vld [vmem:[%s1 + $0x50] sm:$0xff]
  %v42 = vld [vmem:[%s1 + $0x58] sm:$0xff]
  %v43 = vld [vmem:[%s1 + $0x60] sm:$0xff]
  %v44 = vld [vmem:[%s1 + $0x68] sm:$0xff]
  %v45 = vld [vmem:[%s1 + $0x70] sm:$0xff]
  %v46 = vld [vmem:[%s1 + $0x78] sm:$0xff]
  %v47 = vld [vmem:[%s1 + $0x80] sm:$0xff]
  %v48 = vld [vmem:[%s1 + $0x88] sm:$0xff]
  %v49 = vld [vmem:[%s1 + $0x90] sm:$0xff]
  %v50 = vld [vmem:[%s1 + $0x98] sm:$0xff]
  %v51 = vld [vmem:[%s1 + $0xa0] sm:$0xff]
  %v52 = vld [vmem:[%s1 + $0xa8] sm:$0xff]
  %v53 = vld [vmem:[%s1 + $0xb0] sm:$0xff]
  %v54 = vld [vmem:[%s1 + $0xb8] sm:$0xff]
  %v55 = vld [vmem:[%s1 + $0xc0] sm:$0xff]
  %v56 = vld [vmem:[%s1 + $0xc8] sm:$0xff]
  %v57 = vld [vmem:[%s1 + $0xd0] sm:$0xff]
  %v58 = vld [vmem:[%s1 + $0xd8] sm:$0xff]
  %v59 = vld [vmem:[%s1 + $0xe0] sm:$0xff]
  %v60 = vld [vmem:[%s1 + $0xe8] sm:$0xff]
  %v61 = vld [vmem:[%s1 + $0xf0] sm:$0xff]
  %v62 = vld [vmem:[%s1 + $0xf8] sm:$0xff]
  %v63 = vld [vmem:[%s1 + $0x100] sm:$0xff]
  %v64 = vld [vmem:[%s1 + $0x108] sm:$0xff]
  %v65 = vld [vmem:[%s1 + $0x110] sm:$0xff]
  %v66 = vld [vmem:[%s1 + $0x118] sm:$0xff]
  %v67 = vld [vmem:[%s1 + $0x120] sm:$0xff]
  %v68 = vld [vmem:[%s1 + $0x128] sm:$0xff]
  %v69 = vld [vmem:[%s1 + $0x130] sm:$0xff]
  %v70 = vld [vmem:[%s1 + $0x138] sm:$0xff]
  %v71 = vld [vmem:[%s1 + $0x140] sm:$0xff]
  %v72 = vld [vmem:[%s1 + $0x148] sm:$0xff]
  %v73 = vld [vmem:[%s1 + $0x150] sm:$0xff]
  %v74 = vld [vmem:[%s1 + $0x158] sm:$0xff]
  %v75 = vld [vmem:[%s1 + $0x160] sm:$0xff]
  %v76 = vld [vmem:[%s1 + $0x168] sm:$0xff]
  %v77 = vld [vmem:[%s1 + $0x170] sm:$0xff]
  %v78 = vld [vmem:[%s1 + $0x178] sm:$0xff]
  %v79 = vld [vmem:[%s1 + $0x180] sm:$0xff]
  %v80 = vld [vmem:[%s1 + $0x188] sm:$0xff]
  %v81 = vld [vmem:[%s1 + $0x190] sm:$0xff]
  %v82 = vld [vmem:[%s1 + $0x198] sm:$0xff]
  %v83 = vld [vmem:[%s1 + $0x1a0] sm:$0xff]
  %v84 = vld [vmem:[%s1 + $0x1a8] sm:$0xff]
  %v85 = vld [vmem:[%s1 + $0x1b0] sm:$0xff]
  %v86 = vld [vmem:[%s1 + $0x1b8] sm:$0xff]
  %v87 = vld [vmem:[%s1 + $0x1c0] sm:$0xff]
  %v88 = vld [vmem:[%s1 + $0x1c8] sm:$0xff]
  %v89 = vld [vmem:[%s1 + $0x1d0] sm:$0xff]
  %v90 = vld [vmem:[%s1 + $0x1d8] sm:$0xff]
  %v91 = vld [vmem:[%s1 + $0x1e0] sm:$0xff]
  %v92 = vld [vmem:[%s1 + $0x1e8] sm:$0xff]
  %v93 = vld [vmem:[%s1 + $0x1f0] sm:$0xff]
  %v94 = vld [vmem:[%s1 + $0x1f8] sm:$0xff]
  %vm95 = vcmask 64512
  %v97 = vsel %vm95, %v31, 0
  %v100 = vsel %vm95, %v32, 0
  %v103 = vsel %vm95, %v33, 0
  %v106 = vsel %vm95, %v34, 0
  %v109 = vsel %vm95, %v35, 0
  %v112 = vsel %vm95, %v36, 0
  %v115 = vsel %vm95, %v37, 0
  %v118 = vsel %vm95, %v38, 0
  %v121 = vsel %vm95, %v39, 0
  %v124 = vsel %vm95, %v40, 0
  %v127 = vsel %vm95, %v41, 0
  %v130 = vsel %vm95, %v42, 0
  %v133 = vsel %vm95, %v43, 0
  %v136 = vsel %vm95, %v44, 0
  %v139 = vsel %vm95, %v45, 0
  %v142 = vsel %vm95, %v46, 0
  %v145 = vsel %vm95, %v47, 0
  %v148 = vsel %vm95, %v48, 0
  %v151 = vsel %vm95, %v49, 0
  %v154 = vsel %vm95, %v50, 0
  %v157 = vsel %vm95, %v51, 0
  %v160 = vsel %vm95, %v52, 0
  %v163 = vsel %vm95, %v53, 0
  %v166 = vsel %vm95, %v54, 0
  %v169 = vsel %vm95, %v55, 0
  %v172 = vsel %vm95, %v56, 0
  %v175 = vsel %vm95, %v57, 0
  %v178 = vsel %vm95, %v58, 0
  %v181 = vsel %vm95, %v59, 0
  %v184 = vsel %vm95, %v60, 0
  %v187 = vsel %vm95, %v61, 0
  %v190 = vsel %vm95, %v62, 0
  %v193 = vsel %vm95, %v63, 0
  %v196 = vsel %vm95, %v64, 0
  %v199 = vsel %vm95, %v65, 0
  %v202 = vsel %vm95, %v66, 0
  %v205 = vsel %vm95, %v67, 0
  %v208 = vsel %vm95, %v68, 0
  %v211 = vsel %vm95, %v69, 0
  %v214 = vsel %vm95, %v70, 0
  %v217 = vsel %vm95, %v71, 0
  %v220 = vsel %vm95, %v72, 0
  %v223 = vsel %vm95, %v73, 0
  %v226 = vsel %vm95, %v74, 0
  %v229 = vsel %vm95, %v75, 0
  %v232 = vsel %vm95, %v76, 0
  %v235 = vsel %vm95, %v77, 0
  %v238 = vsel %vm95, %v78, 0
  %v241 = vsel %vm95, %v79, 0
  %v244 = vsel %vm95, %v80, 0
  %v247 = vsel %vm95, %v81, 0
  %v250 = vsel %vm95, %v82, 0
  %v253 = vsel %vm95, %v83, 0
  %v256 = vsel %vm95, %v84, 0
  %v259 = vsel %vm95, %v85, 0
  %v262 = vsel %vm95, %v86, 0
  %v265 = vsel %vm95, %v87, 0
  %v268 = vsel %vm95, %v88, 0
  %v271 = vsel %vm95, %v89, 0
  %v274 = vsel %vm95, %v90, 0
  %v277 = vsel %vm95, %v91, 0
  %v280 = vsel %vm95, %v92, 0
  %v283 = vsel %vm95, %v93, 0
  %v286 = vsel %vm95, %v94, 0
  %288 = vmatprep.subr.mxu0 0.0
  %289 = vmatpush1.msra.mxu0 0.0
  %290 = vmatprep.subr.mxu0 0.0
  %291 = vmatpush1.msra.mxu0 0.0
  %292 = vmatprep.subr.mxu0 0.0
  %293 = vmatpush1.msra.mxu0 0.0
  %294 = vmatprep.subr.mxu0 0.0
  %295 = vmatpush1.msra.mxu0 0.0
  %296 = vmatprep.subr.mxu0 0.0
  %297 = vmatpush1.msra.mxu0 0.0
  %298 = vmatprep.subr.mxu0 0.0
  %299 = vmatpush1.msra.mxu0 0.0
  %300 = vmatprep.subr.mxu0 0.0
  %301 = vmatpush1.msra.mxu0 0.0
  %302 = vmatprep.subr.mxu0 0.0
  %303 = vmatpush1.msra.mxu0 0.0
  %304 = vmatprep.subr.mxu0 0.0
  %305 = vmatpush1.msra.mxu0 0.0
  %306 = vmatprep.subr.mxu0 0.0
  %307 = vmatpush1.msra.mxu0 0.0
  %308 = vmatprep.subr.mxu0 0.0
  %309 = vmatpush1.msra.mxu0 0.0
  %310 = vmatprep.subr.mxu0 0.0
  %311 = vmatpush1.msra.mxu0 0.0
  %312 = vmatprep.subr.mxu0 0.0
  %313 = vmatpush1.msra.mxu0 0.0
  %314 = vmatprep.subr.mxu0 0.0
  %315 = vmatpush1.msra.mxu0 0.0
  %316 = vmatprep.subr.mxu0 0.0
  %317 = vmatpush1.msra.mxu0 0.0
  %318 = vmatprep.subr.mxu0 0.0
  %319 = vmatpush1.msra.mxu0 %v30
  %320 = vmatprep.subr.mxu0 0.0
  %321 = vmatpush2.msra.mxu0 0.0
  %322 = vmatprep.subr.mxu0 0.0
  %323 = vmatpush2.msra.mxu0 0.0
  %324 = vmatprep.subr.mxu0 0.0
  %325 = vmatpush2.msra.mxu0 0.0
  %326 = vmatprep.subr.mxu0 0.0
  %327 = vmatpush2.msra.mxu0 0.0
  %328 = vmatprep.subr.mxu0 0.0
  %329 = vmatpush2.msra.mxu0 0.0
  %330 = vmatprep.subr.mxu0 0.0
  %331 = vmatpush2.msra.mxu0 0.0
  %332 = vmatprep.subr.mxu0 0.0
  %333 = vmatpush2.msra.mxu0 0.0
  %334 = vmatprep.subr.mxu0 0.0
  %335 = vmatpush2.msra.mxu0 0.0
  %336 = vmatprep.subr.mxu0 0.0
  %337 = vmatpush2.msra.mxu0 0.0
  %338 = vmatprep.subr.mxu0 0.0
  %339 = vmatpush2.msra.mxu0 0.0
  %340 = vmatprep.subr.mxu0 0.0
  %341 = vmatpush2.msra.mxu0 0.0
  %342 = vmatprep.subr.mxu0 0.0
  %343 = vmatpush2.msra.mxu0 0.0
  %344 = vmatprep.subr.mxu0 0.0
  %345 = vmatpush2.msra.mxu0 0.0
  %346 = vmatprep.subr.mxu0 0.0
  %347 = vmatpush2.msra.mxu0 0.0
  %348 = vmatprep.subr.mxu0 0.0
  %349 = vmatpush2.msra.mxu0 0.0
  %350 = vmatprep.subr.mxu0 0.0
  %351 = vmatpush2.msra.mxu0 0.0
  %352 = vmatprep.mubr.f32.mxu0 0.0
  %353 = vmatmul.mubr.f32.gmra.mxu0 %v97
  %v354 = vpop.f32.mrf.mxu0
  %v355 = vadd.f32 0.0, %v354
  %v356 = vpop.f32.mrf.mxu0
  %357 = vmatprep.mubr.f32.mxu0 0.0
  %358 = vmatmul.mubr.f32.gmra.mxu0 %v100
  %v359 = vpop.f32.mrf.mxu0
  %v360 = vadd.f32 0.0, %v359
  %v361 = vpop.f32.mrf.mxu0
  %362 = vmatprep.mubr.f32.mxu0 0.0
  %363 = vmatmul.mubr.f32.gmra.mxu0 %v103
  %v364 = vpop.f32.mrf.mxu0
  %v365 = vadd.f32 0.0, %v364
  %v366 = vpop.f32.mrf.mxu0
  %367 = vmatprep.mubr.f32.mxu0 0.0
  %368 = vmatmul.mubr.f32.gmra.mxu0 %v106
  %v369 = vpop.f32.mrf.mxu0
  %v370 = vadd.f32 0.0, %v369
  %v371 = vpop.f32.mrf.mxu0
  %372 = vmatprep.mubr.f32.mxu0 0.0
  %373 = vmatmul.mubr.f32.gmra.mxu0 %v109
  %v374 = vpop.f32.mrf.mxu0
  %v375 = vadd.f32 0.0, %v374
  %v376 = vpop.f32.mrf.mxu0
  %377 = vmatprep.mubr.f32.mxu0 0.0
  %378 = vmatmul.mubr.f32.gmra.mxu0 %v112
  %v379 = vpop.f32.mrf.mxu0
  %v380 = vadd.f32 0.0, %v379
  %v381 = vpop.f32.mrf.mxu0
  %382 = vmatprep.mubr.f32.mxu0 0.0
  %383 = vmatmul.mubr.f32.gmra.mxu0 %v115
  %v384 = vpop.f32.mrf.mxu0
  %v385 = vadd.f32 0.0, %v384
  %v386 = vpop.f32.mrf.mxu0
  %387 = vmatprep.mubr.f32.mxu0 0.0
  %388 = vmatmul.mubr.f32.gmra.mxu0 %v118
  %v389 = vpop.f32.mrf.mxu0
  %v390 = vadd.f32 0.0, %v389
  %v391 = vpop.f32.mrf.mxu0
  %392 = vmatprep.mubr.f32.mxu0 0.0
  %393 = vmatmul.mubr.f32.gmra.mxu0 %v121
  %v394 = vpop.f32.mrf.mxu0
  %v395 = vadd.f32 0.0, %v394
  %v396 = vpop.f32.mrf.mxu0
  %397 = vmatprep.mubr.f32.mxu0 0.0
  %398 = vmatmul.mubr.f32.gmra.mxu0 %v124
  %v399 = vpop.f32.mrf.mxu0
  %v400 = vadd.f32 0.0, %v399
  %v401 = vpop.f32.mrf.mxu0
  %402 = vmatprep.mubr.f32.mxu0 0.0
  %403 = vmatmul.mubr.f32.gmra.mxu0 %v127
  %v404 = vpop.f32.mrf.mxu0
  %v405 = vadd.f32 0.0, %v404
  %v406 = vpop.f32.mrf.mxu0
  %407 = vmatprep.mubr.f32.mxu0 0.0
  %408 = vmatmul.mubr.f32.gmra.mxu0 %v130
  %v409 = vpop.f32.mrf.mxu0
  %v410 = vadd.f32 0.0, %v409
  %v411 = vpop.f32.mrf.mxu0
  %412 = vmatprep.mubr.f32.mxu0 0.0
  %413 = vmatmul.mubr.f32.gmra.mxu0 %v133
  %v414 = vpop.f32.mrf.mxu0
  %v415 = vadd.f32 0.0, %v414
  %v416 = vpop.f32.mrf.mxu0
  %417 = vmatprep.mubr.f32.mxu0 0.0
  %418 = vmatmul.mubr.f32.gmra.mxu0 %v136
  %v419 = vpop.f32.mrf.mxu0
  %v420 = vadd.f32 0.0, %v419
  %v421 = vpop.f32.mrf.mxu0
  %422 = vmatprep.mubr.f32.mxu0 0.0
  %423 = vmatmul.mubr.f32.gmra.mxu0 %v139
  %v424 = vpop.f32.mrf.mxu0
  %v425 = vadd.f32 0.0, %v424
  %v426 = vpop.f32.mrf.mxu0
  %427 = vmatprep.mubr.f32.mxu0 0.0
  %428 = vmatmul.mubr.f32.gmra.mxu0 %v142
  %v429 = vpop.f32.mrf.mxu0
  %v430 = vadd.f32 0.0, %v429
  %v431 = vpop.f32.mrf.mxu0
  %432 = vmatprep.mubr.f32.mxu0 0.0
  %433 = vmatmul.mubr.f32.gmra.mxu0 %v145
  %v434 = vpop.f32.mrf.mxu0
  %v435 = vadd.f32 0.0, %v434
  %v436 = vpop.f32.mrf.mxu0
  %437 = vmatprep.mubr.f32.mxu0 0.0
  %438 = vmatmul.mubr.f32.gmra.mxu0 %v148
  %v439 = vpop.f32.mrf.mxu0
  %v440 = vadd.f32 0.0, %v439
  %v441 = vpop.f32.mrf.mxu0
  %442 = vmatprep.mubr.f32.mxu0 0.0
  %443 = vmatmul.mubr.f32.gmra.mxu0 %v151
  %v444 = vpop.f32.mrf.mxu0
  %v445 = vadd.f32 0.0, %v444
  %v446 = vpop.f32.mrf.mxu0
  %447 = vmatprep.mubr.f32.mxu0 0.0
  %448 = vmatmul.mubr.f32.gmra.mxu0 %v154
  %v449 = vpop.f32.mrf.mxu0
  %v450 = vadd.f32 0.0, %v449
  %v451 = vpop.f32.mrf.mxu0
  %452 = vmatprep.mubr.f32.mxu0 0.0
  %453 = vmatmul.mubr.f32.gmra.mxu0 %v157
  %v454 = vpop.f32.mrf.mxu0
  %v455 = vadd.f32 0.0, %v454
  %v456 = vpop.f32.mrf.mxu0
  %457 = vmatprep.mubr.f32.mxu0 0.0
  %458 = vmatmul.mubr.f32.gmra.mxu0 %v160
  %v459 = vpop.f32.mrf.mxu0
  %v460 = vadd.f32 0.0, %v459
  %v461 = vpop.f32.mrf.mxu0
  %462 = vmatprep.mubr.f32.mxu0 0.0
  %463 = vmatmul.mubr.f32.gmra.mxu0 %v163
  %v464 = vpop.f32.mrf.mxu0
  %v465 = vadd.f32 0.0, %v464
  %v466 = vpop.f32.mrf.mxu0
  %467 = vmatprep.mubr.f32.mxu0 0.0
  %468 = vmatmul.mubr.f32.gmra.mxu0 %v166
  %v469 = vpop.f32.mrf.mxu0
  %v470 = vadd.f32 0.0, %v469
  %v471 = vpop.f32.mrf.mxu0
  %472 = vmatprep.mubr.f32.mxu0 0.0
  %473 = vmatmul.mubr.f32.gmra.mxu0 %v169
  %v474 = vpop.f32.mrf.mxu0
  %v475 = vadd.f32 0.0, %v474
  %v476 = vpop.f32.mrf.mxu0
  %477 = vmatprep.mubr.f32.mxu0 0.0
  %478 = vmatmul.mubr.f32.gmra.mxu0 %v172
  %v479 = vpop.f32.mrf.mxu0
  %v480 = vadd.f32 0.0, %v479
  %v481 = vpop.f32.mrf.mxu0
  %482 = vmatprep.mubr.f32.mxu0 0.0
  %483 = vmatmul.mubr.f32.gmra.mxu0 %v175
  %v484 = vpop.f32.mrf.mxu0
  %v485 = vadd.f32 0.0, %v484
  %v486 = vpop.f32.mrf.mxu0
  %487 = vmatprep.mubr.f32.mxu0 0.0
  %488 = vmatmul.mubr.f32.gmra.mxu0 %v178
  %v489 = vpop.f32.mrf.mxu0
  %v490 = vadd.f32 0.0, %v489
  %v491 = vpop.f32.mrf.mxu0
  %492 = vmatprep.mubr.f32.mxu0 0.0
  %493 = vmatmul.mubr.f32.gmra.mxu0 %v181
  %v494 = vpop.f32.mrf.mxu0
  %v495 = vadd.f32 0.0, %v494
  %v496 = vpop.f32.mrf.mxu0
  %497 = vmatprep.mubr.f32.mxu0 0.0
  %498 = vmatmul.mubr.f32.gmra.mxu0 %v184
  %v499 = vpop.f32.mrf.mxu0
  %v500 = vadd.f32 0.0, %v499
  %v501 = vpop.f32.mrf.mxu0
  %502 = vmatprep.mubr.f32.mxu0 0.0
  %503 = vmatmul.mubr.f32.gmra.mxu0 %v187
  %v504 = vpop.f32.mrf.mxu0
  %v505 = vadd.f32 0.0, %v504
  %v506 = vpop.f32.mrf.mxu0
  %507 = vmatprep.mubr.f32.mxu0 0.0
  %508 = vmatmul.mubr.f32.gmra.mxu0 %v190
  %v509 = vpop.f32.mrf.mxu0
  %v510 = vadd.f32 0.0, %v509
  %v511 = vpop.f32.mrf.mxu0
  %512 = vmatprep.mubr.f32.mxu0 0.0
  %513 = vmatmul.mubr.f32.gmra.mxu0 %v193
  %v514 = vpop.f32.mrf.mxu0
  %v515 = vadd.f32 0.0, %v514
  %v516 = vpop.f32.mrf.mxu0
  %517 = vmatprep.mubr.f32.mxu0 0.0
  %518 = vmatmul.mubr.f32.gmra.mxu0 %v196
  %v519 = vpop.f32.mrf.mxu0
  %v520 = vadd.f32 0.0, %v519
  %v521 = vpop.f32.mrf.mxu0
  %522 = vmatprep.mubr.f32.mxu0 0.0
  %523 = vmatmul.mubr.f32.gmra.mxu0 %v199
  %v524 = vpop.f32.mrf.mxu0
  %v525 = vadd.f32 0.0, %v524
  %v526 = vpop.f32.mrf.mxu0
  %527 = vmatprep.mubr.f32.mxu0 0.0
  %528 = vmatmul.mubr.f32.gmra.mxu0 %v202
  %v529 = vpop.f32.mrf.mxu0
  %v530 = vadd.f32 0.0, %v529
  %v531 = vpop.f32.mrf.mxu0
  %532 = vmatprep.mubr.f32.mxu0 0.0
  %533 = vmatmul.mubr.f32.gmra.mxu0 %v205
  %v534 = vpop.f32.mrf.mxu0
  %v535 = vadd.f32 0.0, %v534
  %v536 = vpop.f32.mrf.mxu0
  %537 = vmatprep.mubr.f32.mxu0 0.0
  %538 = vmatmul.mubr.f32.gmra.mxu0 %v208
  %v539 = vpop.f32.mrf.mxu0
  %v540 = vadd.f32 0.0, %v539
  %v541 = vpop.f32.mrf.mxu0
  %542 = vmatprep.mubr.f32.mxu0 0.0
  %543 = vmatmul.mubr.f32.gmra.mxu0 %v211
  %v544 = vpop.f32.mrf.mxu0
  %v545 = vadd.f32 0.0, %v544
  %v546 = vpop.f32.mrf.mxu0
  %547 = vmatprep.mubr.f32.mxu0 0.0
  %548 = vmatmul.mubr.f32.gmra.mxu0 %v214
  %v549 = vpop.f32.mrf.mxu0
  %v550 = vadd.f32 0.0, %v549
  %v551 = vpop.f32.mrf.mxu0
  %552 = vmatprep.mubr.f32.mxu0 0.0
  %553 = vmatmul.mubr.f32.gmra.mxu0 %v217
  %v554 = vpop.f32.mrf.mxu0
  %v555 = vadd.f32 0.0, %v554
  %v556 = vpop.f32.mrf.mxu0
  %557 = vmatprep.mubr.f32.mxu0 0.0
  %558 = vmatmul.mubr.f32.gmra.mxu0 %v220
  %v559 = vpop.f32.mrf.mxu0
  %v560 = vadd.f32 0.0, %v559
  %v561 = vpop.f32.mrf.mxu0
  %562 = vmatprep.mubr.f32.mxu0 0.0
  %563 = vmatmul.mubr.f32.gmra.mxu0 %v223
  %v564 = vpop.f32.mrf.mxu0
  %v565 = vadd.f32 0.0, %v564
  %v566 = vpop.f32.mrf.mxu0
  %567 = vmatprep.mubr.f32.mxu0 0.0
  %568 = vmatmul.mubr.f32.gmra.mxu0 %v226
  %v569 = vpop.f32.mrf.mxu0
  %v570 = vadd.f32 0.0, %v569
  %v571 = vpop.f32.mrf.mxu0
  %572 = vmatprep.mubr.f32.mxu0 0.0
  %573 = vmatmul.mubr.f32.gmra.mxu0 %v229
  %v574 = vpop.f32.mrf.mxu0
  %v575 = vadd.f32 0.0, %v574
  %v576 = vpop.f32.mrf.mxu0
  %577 = vmatprep.mubr.f32.mxu0 0.0
  %578 = vmatmul.mubr.f32.gmra.mxu0 %v232
  %v579 = vpop.f32.mrf.mxu0
  %v580 = vadd.f32 0.0, %v579
  %v581 = vpop.f32.mrf.mxu0
  %582 = vmatprep.mubr.f32.mxu0 0.0
  %583 = vmatmul.mubr.f32.gmra.mxu0 %v235
  %v584 = vpop.f32.mrf.mxu0
  %v585 = vadd.f32 0.0, %v584
  %v586 = vpop.f32.mrf.mxu0
  %587 = vmatprep.mubr.f32.mxu0 0.0
  %588 = vmatmul.mubr.f32.gmra.mxu0 %v238
  %v589 = vpop.f32.mrf.mxu0
  %v590 = vadd.f32 0.0, %v589
  %v591 = vpop.f32.mrf.mxu0
  %592 = vmatprep.mubr.f32.mxu0 0.0
  %593 = vmatmul.mubr.f32.gmra.mxu0 %v241
  %v594 = vpop.f32.mrf.mxu0
  %v595 = vadd.f32 0.0, %v594
  %v596 = vpop.f32.mrf.mxu0
  %597 = vmatprep.mubr.f32.mxu0 0.0
  %598 = vmatmul.mubr.f32.gmra.mxu0 %v244
  %v599 = vpop.f32.mrf.mxu0
  %v600 = vadd.f32 0.0, %v599
  %v601 = vpop.f32.mrf.mxu0
  %602 = vmatprep.mubr.f32.mxu0 0.0
  %603 = vmatmul.mubr.f32.gmra.mxu0 %v247
  %v604 = vpop.f32.mrf.mxu0
  %v605 = vadd.f32 0.0, %v604
  %v606 = vpop.f32.mrf.mxu0
  %607 = vmatprep.mubr.f32.mxu0 0.0
  %608 = vmatmul.mubr.f32.gmra.mxu0 %v250
  %v609 = vpop.f32.mrf.mxu0
  %v610 = vadd.f32 0.0, %v609
  %v611 = vpop.f32.mrf.mxu0
  %612 = vmatprep.mubr.f32.mxu0 0.0
  %613 = vmatmul.mubr.f32.gmra.mxu0 %v253
  %v614 = vpop.f32.mrf.mxu0
  %v615 = vadd.f32 0.0, %v614
  %v616 = vpop.f32.mrf.mxu0
  %617 = vmatprep.mubr.f32.mxu0 0.0
  %618 = vmatmul.mubr.f32.gmra.mxu0 %v256
  %v619 = vpop.f32.mrf.mxu0
  %v620 = vadd.f32 0.0, %v619
  %v621 = vpop.f32.mrf.mxu0
  %622 = vmatprep.mubr.f32.mxu0 0.0
  %623 = vmatmul.mubr.f32.gmra.mxu0 %v259
  %v624 = vpop.f32.mrf.mxu0
  %v625 = vadd.f32 0.0, %v624
  %v626 = vpop.f32.mrf.mxu0
  %627 = vmatprep.mubr.f32.mxu0 0.0
  %628 = vmatmul.mubr.f32.gmra.mxu0 %v262
  %v629 = vpop.f32.mrf.mxu0
  %v630 = vadd.f32 0.0, %v629
  %v631 = vpop.f32.mrf.mxu0
  %632 = vmatprep.mubr.f32.mxu0 0.0
  %633 = vmatmul.mubr.f32.gmra.mxu0 %v265
  %v634 = vpop.f32.mrf.mxu0
  %v635 = vadd.f32 0.0, %v634
  %v636 = vpop.f32.mrf.mxu0
  %637 = vmatprep.mubr.f32.mxu0 0.0
  %638 = vmatmul.mubr.f32.gmra.mxu0 %v268
  %v639 = vpop.f32.mrf.mxu0
  %v640 = vadd.f32 0.0, %v639
  %v641 = vpop.f32.mrf.mxu0
  %642 = vmatprep.mubr.f32.mxu0 0.0
  %643 = vmatmul.mubr.f32.gmra.mxu0 %v271
  %v644 = vpop.f32.mrf.mxu0
  %v645 = vadd.f32 0.0, %v644
  %v646 = vpop.f32.mrf.mxu0
  %647 = vmatprep.mubr.f32.mxu0 0.0
  %648 = vmatmul.mubr.f32.gmra.mxu0 %v274
  %v649 = vpop.f32.mrf.mxu0
  %v650 = vadd.f32 0.0, %v649
  %v651 = vpop.f32.mrf.mxu0
  %652 = vmatprep.mubr.f32.mxu0 0.0
  %653 = vmatmul.mubr.f32.gmra.mxu0 %v277
  %v654 = vpop.f32.mrf.mxu0
  %v655 = vadd.f32 0.0, %v654
  %v656 = vpop.f32.mrf.mxu0
  %657 = vmatprep.mubr.f32.mxu0 0.0
  %658 = vmatmul.mubr.f32.gmra.mxu0 %v280
  %v659 = vpop.f32.mrf.mxu0
  %v660 = vadd.f32 0.0, %v659
  %v661 = vpop.f32.mrf.mxu0
  %662 = vmatprep.mubr.f32.mxu0 0.0
  %663 = vmatmul.mubr.f32.gmra.mxu0 %v283
  %v664 = vpop.f32.mrf.mxu0
  %v665 = vadd.f32 0.0, %v664
  %v666 = vpop.f32.mrf.mxu0
  %667 = vmatprep.mubr.f32.mxu0 0.0
  %668 = vmatmul.mubr.f32.gmra.mxu0 %v286
  %v669 = vpop.f32.mrf.mxu0
  %v670 = vadd.f32 0.0, %v669
  %v671 = vpop.f32.mrf.mxu0
  %672 = vdwg.mxu0
  %v673 = vmax.f32 %v355, 0.0
  %v674 = vmax.f32 %v360, 0.0
  %v675 = vmax.f32 %v365, 0.0
  %v676 = vmax.f32 %v370, 0.0
  %v677 = vmax.f32 %v375, 0.0
  %v678 = vmax.f32 %v380, 0.0
  %v679 = vmax.f32 %v385, 0.0
  %v680 = vmax.f32 %v390, 0.0
  %v681 = vmax.f32 %v395, 0.0
  %v682 = vmax.f32 %v400, 0.0
  %v683 = vmax.f32 %v405, 0.0
  %v684 = vmax.f32 %v410, 0.0
  %v685 = vmax.f32 %v415, 0.0
  %v686 = vmax.f32 %v420, 0.0
  %v687 = vmax.f32 %v425, 0.0
  %v688 = vmax.f32 %v430, 0.0
  %v689 = vmax.f32 %v435, 0.0
  %v690 = vmax.f32 %v440, 0.0
  %v691 = vmax.f32 %v445, 0.0
  %v692 = vmax.f32 %v450, 0.0
  %v693 = vmax.f32 %v455, 0.0
  %v694 = vmax.f32 %v460, 0.0
  %v695 = vmax.f32 %v465, 0.0
  %v696 = vmax.f32 %v470, 0.0
  %v697 = vmax.f32 %v475, 0.0
  %v698 = vmax.f32 %v480, 0.0
  %v699 = vmax.f32 %v485, 0.0
  %v700 = vmax.f32 %v490, 0.0
  %v701 = vmax.f32 %v495, 0.0
  %v702 = vmax.f32 %v500, 0.0
  %v703 = vmax.f32 %v505, 0.0
  %v704 = vmax.f32 %v510, 0.0
  %v705 = vmax.f32 %v515, 0.0
  %v706 = vmax.f32 %v520, 0.0
  %v707 = vmax.f32 %v525, 0.0
  %v708 = vmax.f32 %v530, 0.0
  %v709 = vmax.f32 %v535, 0.0
  %v710 = vmax.f32 %v540, 0.0
  %v711 = vmax.f32 %v545, 0.0
  %v712 = vmax.f32 %v550, 0.0
  %v713 = vmax.f32 %v555, 0.0
  %v714 = vmax.f32 %v560, 0.0
  %v715 = vmax.f32 %v565, 0.0
  %v716 = vmax.f32 %v570, 0.0
  %v717 = vmax.f32 %v575, 0.0
  %v718 = vmax.f32 %v580, 0.0
  %v719 = vmax.f32 %v585, 0.0
  %v720 = vmax.f32 %v590, 0.0
  %v721 = vmax.f32 %v595, 0.0
  %v722 = vmax.f32 %v600, 0.0
  %v723 = vmax.f32 %v605, 0.0
  %v724 = vmax.f32 %v610, 0.0
  %v725 = vmax.f32 %v615, 0.0
  %v726 = vmax.f32 %v620, 0.0
  %v727 = vmax.f32 %v625, 0.0
  %v728 = vmax.f32 %v630, 0.0
  %v729 = vmax.f32 %v635, 0.0
  %v730 = vmax.f32 %v640, 0.0
  %v731 = vmax.f32 %v645, 0.0
  %v732 = vmax.f32 %v650, 0.0
  %v733 = vmax.f32 %v655, 0.0
  %v734 = vmax.f32 %v660, 0.0
  %v735 = vmax.f32 %v665, 0.0
  %v736 = vmax.f32 %v670, 0.0
  %v737 = vpack.c.bf16 %v674, %v673
  %v738 = vpack.c.bf16 %v676, %v675
  %v739 = vpack.c.bf16 %v678, %v677
  %v740 = vpack.c.bf16 %v680, %v679
  %v741 = vpack.c.bf16 %v682, %v681
  %v742 = vpack.c.bf16 %v684, %v683
  %v743 = vpack.c.bf16 %v686, %v685
  %v744 = vpack.c.bf16 %v688, %v687
  %v745 = vpack.c.bf16 %v690, %v689
  %v746 = vpack.c.bf16 %v692, %v691
  %v747 = vpack.c.bf16 %v694, %v693
  %v748 = vpack.c.bf16 %v696, %v695
  %v749 = vpack.c.bf16 %v698, %v697
  %v750 = vpack.c.bf16 %v700, %v699
  %v751 = vpack.c.bf16 %v702, %v701
  %v752 = vpack.c.bf16 %v704, %v703
  %v753 = vpack.c.bf16 %v706, %v705
  %v754 = vpack.c.bf16 %v708, %v707
  %v755 = vpack.c.bf16 %v710, %v709
  %v756 = vpack.c.bf16 %v712, %v711
  %v757 = vpack.c.bf16 %v714, %v713
  %v758 = vpack.c.bf16 %v716, %v715
  %v759 = vpack.c.bf16 %v718, %v717
  %v760 = vpack.c.bf16 %v720, %v719
  %v761 = vpack.c.bf16 %v722, %v721
  %v762 = vpack.c.bf16 %v724, %v723
  %v763 = vpack.c.bf16 %v726, %v725
  %v764 = vpack.c.bf16 %v728, %v727
  %v765 = vpack.c.bf16 %v730, %v729
  %v766 = vpack.c.bf16 %v732, %v731
  %v767 = vpack.c.bf16 %v734, %v733
  %v768 = vpack.c.bf16 %v736, %v735
  %v769 = vld [vmem:[%s2] sm:$0xff]
  %v770 = vld [vmem:[%s2 + $0x8] sm:$0xff]
  %v771 = vld [vmem:[%s2 + $0x10] sm:$0xff]
  %v772 = vld [vmem:[%s2 + $0x18] sm:$0xff]
  %v773 = vld [vmem:[%s2 + $0x20] sm:$0xff]
  %v774 = vld [vmem:[%s2 + $0x28] sm:$0xff]
  %v775 = vld [vmem:[%s2 + $0x30] sm:$0xff]
  %v776 = vld [vmem:[%s2 + $0x38] sm:$0xff]
  %v777 = vld [vmem:[%s2 + $0x40] sm:$0xff]
  %v778 = vld [vmem:[%s2 + $0x48] sm:$0xff]
  %v779 = vld [vmem:[%s2 + $0x50] sm:$0xff]
  %v780 = vld [vmem:[%s2 + $0x58] sm:$0xff]
  %v781 = vld [vmem:[%s2 + $0x60] sm:$0xff]
  %v782 = vld [vmem:[%s2 + $0x68] sm:$0xff]
  %v783 = vld [vmem:[%s2 + $0x70] sm:$0xff]
  %v784 = vld [vmem:[%s2 + $0x78] sm:$0xff]
  %v785 = vld [vmem:[%s2 + $0x80] sm:$0xff]
  %v786 = vld [vmem:[%s2 + $0x88] sm:$0xff]
  %v787 = vld [vmem:[%s2 + $0x90] sm:$0xff]
  %v788 = vld [vmem:[%s2 + $0x98] sm:$0xff]
  %v789 = vld [vmem:[%s2 + $0xa0] sm:$0xff]
  %v790 = vld [vmem:[%s2 + $0xa8] sm:$0xff]
  %v791 = vld [vmem:[%s2 + $0xb0] sm:$0xff]
  %v792 = vld [vmem:[%s2 + $0xb8] sm:$0xff]
  %v793 = vld [vmem:[%s2 + $0xc0] sm:$0xff]
  %v794 = vld [vmem:[%s2 + $0xc8] sm:$0xff]
  %v795 = vld [vmem:[%s2 + $0xd0] sm:$0xff]
  %v796 = vld [vmem:[%s2 + $0xd8] sm:$0xff]
  %v797 = vld [vmem:[%s2 + $0xe0] sm:$0xff]
  %v798 = vld [vmem:[%s2 + $0xe8] sm:$0xff]
  %v799 = vld [vmem:[%s2 + $0xf0] sm:$0xff]
  %v800 = vld [vmem:[%s2 + $0xf8] sm:$0xff]
  %v801 = vld [vmem:[%s3] sm:$0xff]
  %v802 = vld [vmem:[%s3 + $0x8] sm:$0xff]
  %v803 = vld [vmem:[%s3 + $0x10] sm:$0xff]
  %v804 = vld [vmem:[%s3 + $0x18] sm:$0xff]
  %v805 = vld [vmem:[%s3 + $0x20] sm:$0xff]
  %v806 = vld [vmem:[%s3 + $0x28] sm:$0xff]
  %v807 = vld [vmem:[%s3 + $0x30] sm:$0xff]
  %v808 = vld [vmem:[%s3 + $0x38] sm:$0xff]
  %v809 = vld [vmem:[%s3 + $0x40] sm:$0xff]
  %v810 = vld [vmem:[%s3 + $0x48] sm:$0xff]
  %v811 = vld [vmem:[%s3 + $0x50] sm:$0xff]
  %v812 = vld [vmem:[%s3 + $0x58] sm:$0xff]
  %v813 = vld [vmem:[%s3 + $0x60] sm:$0xff]
  %v814 = vld [vmem:[%s3 + $0x68] sm:$0xff]
  %v815 = vld [vmem:[%s3 + $0x70] sm:$0xff]
  %v816 = vld [vmem:[%s3 + $0x78] sm:$0xff]
  %818 = vset.pattern.permute.xlu0 0
  %819 = vperm.xlu0 %818, %v801
  %v820 = vpop.permute.xlu0 %819
  %823 = vset.pattern.permute.xlu0 0
  %824 = vperm.xlu0 %823, %v802
  %v825 = vpop.permute.xlu0 %824
  %828 = vset.pattern.permute.xlu0 0
  %829 = vperm.xlu0 %828, %v803
  %v830 = vpop.permute.xlu0 %829
  %833 = vset.pattern.permute.xlu0 0
  %834 = vperm.xlu0 %833, %v804
  %v835 = vpop.permute.xlu0 %834
  %838 = vset.pattern.permute.xlu0 0
  %839 = vperm.xlu0 %838, %v805
  %v840 = vpop.permute.xlu0 %839
  %843 = vset.pattern.permute.xlu0 0
  %844 = vperm.xlu0 %843, %v806
  %v845 = vpop.permute.xlu0 %844
  %848 = vset.pattern.permute.xlu0 0
  %849 = vperm.xlu0 %848, %v807
  %v850 = vpop.permute.xlu0 %849
  %853 = vset.pattern.permute.xlu0 0
  %854 = vperm.xlu0 %853, %v808
  %v855 = vpop.permute.xlu0 %854
  %858 = vset.pattern.permute.xlu0 0
  %859 = vperm.xlu0 %858, %v809
  %v860 = vpop.permute.xlu0 %859
  %863 = vset.pattern.permute.xlu0 0
  %864 = vperm.xlu0 %863, %v810
  %v865 = vpop.permute.xlu0 %864
  %868 = vset.pattern.permute.xlu0 0
  %869 = vperm.xlu0 %868, %v811
  %v870 = vpop.permute.xlu0 %869
  %873 = vset.pattern.permute.xlu0 0
  %874 = vperm.xlu0 %873, %v812
  %v875 = vpop.permute.xlu0 %874
  %878 = vset.pattern.permute.xlu0 0
  %879 = vperm.xlu0 %878, %v813
  %v880 = vpop.permute.xlu0 %879
  %883 = vset.pattern.permute.xlu0 0
  %884 = vperm.xlu0 %883, %v814
  %v885 = vpop.permute.xlu0 %884
  %888 = vset.pattern.permute.xlu0 0
  %889 = vperm.xlu0 %888, %v815
  %v890 = vpop.permute.xlu0 %889
  %893 = vset.pattern.permute.xlu0 0
  %894 = vperm.xlu0 %893, %v816
  %v895 = vpop.permute.xlu0 %894
  %v929 = vunpack.c.l.b16 %v769
  %v930 = vunpack.c.h.b16 %v769
  %v931 = vunpack.c.l.b16 %v770
  %v932 = vunpack.c.h.b16 %v770
  %v933 = vunpack.c.l.b16 %v771
  %v934 = vunpack.c.h.b16 %v771
  %v935 = vunpack.c.l.b16 %v772
  %v936 = vunpack.c.h.b16 %v772
  %v937 = vunpack.c.l.b16 %v773
  %v938 = vunpack.c.h.b16 %v773
  %v939 = vunpack.c.l.b16 %v774
  %v940 = vunpack.c.h.b16 %v774
  %v941 = vunpack.c.l.b16 %v775
  %v942 = vunpack.c.h.b16 %v775
  %v943 = vunpack.c.l.b16 %v776
  %v944 = vunpack.c.h.b16 %v776
  %v945 = vunpack.c.l.b16 %v777
  %v946 = vunpack.c.h.b16 %v777
  %v947 = vunpack.c.l.b16 %v778
  %v948 = vunpack.c.h.b16 %v778
  %v949 = vunpack.c.l.b16 %v779
  %v950 = vunpack.c.h.b16 %v779
  %v951 = vunpack.c.l.b16 %v780
  %v952 = vunpack.c.h.b16 %v780
  %v953 = vunpack.c.l.b16 %v781
  %v954 = vunpack.c.h.b16 %v781
  %v955 = vunpack.c.l.b16 %v782
  %v956 = vunpack.c.h.b16 %v782
  %v957 = vunpack.c.l.b16 %v783
  %v958 = vunpack.c.h.b16 %v783
  %v959 = vunpack.c.l.b16 %v784
  %v960 = vunpack.c.h.b16 %v784
  %v961 = vunpack.c.l.b16 %v785
  %v962 = vunpack.c.h.b16 %v785
  %v963 = vunpack.c.l.b16 %v786
  %v964 = vunpack.c.h.b16 %v786
  %v965 = vunpack.c.l.b16 %v787
  %v966 = vunpack.c.h.b16 %v787
  %v967 = vunpack.c.l.b16 %v788
  %v968 = vunpack.c.h.b16 %v788
  %v969 = vunpack.c.l.b16 %v789
  %v970 = vunpack.c.h.b16 %v789
  %v971 = vunpack.c.l.b16 %v790
  %v972 = vunpack.c.h.b16 %v790
  %v973 = vunpack.c.l.b16 %v791
  %v974 = vunpack.c.h.b16 %v791
  %v975 = vunpack.c.l.b16 %v792
  %v976 = vunpack.c.h.b16 %v792
  %v977 = vunpack.c.l.b16 %v793
  %v978 = vunpack.c.h.b16 %v793
  %v979 = vunpack.c.l.b16 %v794
  %v980 = vunpack.c.h.b16 %v794
  %v981 = vunpack.c.l.b16 %v795
  %v982 = vunpack.c.h.b16 %v795
  %v983 = vunpack.c.l.b16 %v796
  %v984 = vunpack.c.h.b16 %v796
  %v985 = vunpack.c.l.b16 %v797
  %v986 = vunpack.c.h.b16 %v797
  %v987 = vunpack.c.l.b16 %v798
  %v988 = vunpack.c.h.b16 %v798
  %v989 = vunpack.c.l.b16 %v799
  %v990 = vunpack.c.h.b16 %v799
  %v991 = vunpack.c.l.b16 %v800
  %v992 = vunpack.c.h.b16 %v800
  %v993 = vpack.c.b16 %v933, %v929
  %v994 = vpack.c.b16 %v934, %v930
  %v995 = vpack.c.b16 %v935, %v931
  %v996 = vpack.c.b16 %v936, %v932
  %v997 = vpack.c.b16 %v941, %v937
  %v998 = vpack.c.b16 %v942, %v938
  %v999 = vpack.c.b16 %v943, %v939
  %v1000 = vpack.c.b16 %v944, %v940
  %v1001 = vpack.c.b16 %v949, %v945
  %v1002 = vpack.c.b16 %v950, %v946
  %v1003 = vpack.c.b16 %v951, %v947
  %v1004 = vpack.c.b16 %v952, %v948
  %v1005 = vpack.c.b16 %v957, %v953
  %v1006 = vpack.c.b16 %v958, %v954
  %v1007 = vpack.c.b16 %v959, %v955
  %v1008 = vpack.c.b16 %v960, %v956
  %v1009 = vpack.c.b16 %v965, %v961
  %v1010 = vpack.c.b16 %v966, %v962
  %v1011 = vpack.c.b16 %v967, %v963
  %v1012 = vpack.c.b16 %v968, %v964
  %v1013 = vpack.c.b16 %v973, %v969
  %v1014 = vpack.c.b16 %v974, %v970
  %v1015 = vpack.c.b16 %v975, %v971
  %v1016 = vpack.c.b16 %v976, %v972
  %v1017 = vpack.c.b16 %v981, %v977
  %v1018 = vpack.c.b16 %v982, %v978
  %v1019 = vpack.c.b16 %v983, %v979
  %v1020 = vpack.c.b16 %v984, %v980
  %v1021 = vpack.c.b16 %v989, %v985
  %v1022 = vpack.c.b16 %v990, %v986
  %v1023 = vpack.c.b16 %v991, %v987
  %v1024 = vpack.c.b16 %v992, %v988
  %1057 = vmatprep.subr.bf16.mxu0 0
  %1058 = vmatpush1.bf16.msra.mxu0 %v744
  %1059 = vmatprep.subr.bf16.mxu0 0
  %1060 = vmatpush1.bf16.msra.mxu0 %v743
  %1061 = vmatprep.subr.bf16.mxu0 0
  %1062 = vmatpush1.bf16.msra.mxu0 %v742
  %1063 = vmatprep.subr.bf16.mxu0 0
  %1064 = vmatpush1.bf16.msra.mxu0 %v741
  %1065 = vmatprep.subr.bf16.mxu0 0
  %1066 = vmatpush1.bf16.msra.mxu0 %v740
  %1067 = vmatprep.subr.bf16.mxu0 0
  %1068 = vmatpush1.bf16.msra.mxu0 %v739
  %1069 = vmatprep.subr.bf16.mxu0 0
  %1070 = vmatpush1.bf16.msra.mxu0 %v738
  %1071 = vmatprep.subr.bf16.mxu0 0
  %1072 = vmatpush1.bf16.msra.mxu0 %v737
  %1073 = vmatprep.subr.bf16.mxu0 0
  %1074 = vmatpush2.bf16.msra.mxu0 %v752
  %1075 = vmatprep.subr.bf16.mxu0 0
  %1076 = vmatpush2.bf16.msra.mxu0 %v751
  %1077 = vmatprep.subr.bf16.mxu0 0
  %1078 = vmatpush2.bf16.msra.mxu0 %v750
  %1079 = vmatprep.subr.bf16.mxu0 0
  %1080 = vmatpush2.bf16.msra.mxu0 %v749
  %1081 = vmatprep.subr.bf16.mxu0 0
  %1082 = vmatpush2.bf16.msra.mxu0 %v748
  %1083 = vmatprep.subr.bf16.mxu0 0
  %1084 = vmatpush2.bf16.msra.mxu0 %v747
  %1085 = vmatprep.subr.bf16.mxu0 0
  %1086 = vmatpush2.bf16.msra.mxu0 %v746
  %1087 = vmatprep.subr.bf16.mxu0 0
  %1088 = vmatpush2.bf16.msra.mxu0 %v745
  %1089 = vmatprep.mubr.bf16.mxu0 %v994
  %1090 = vmatmul.mubr.bf16.gmra.mxu0 %v993
  %v1091 = vpop.f32.mrf.mxu0
  %v1092 = vadd.f32 %v820, %v1091
  %v1093 = vpop.f32.mrf.mxu0
  %v1094 = vpop.f32.mrf.mxu0
  %v1095 = vadd.f32 %v825, %v1094
  %v1096 = vpop.f32.mrf.mxu0
  %1097 = vmatprep.mubr.bf16.mxu0 %v998
  %1098 = vmatmul.mubr.bf16.gmra.mxu0 %v997
  %v1099 = vpop.f32.mrf.mxu0
  %v1100 = vadd.f32 %v830, %v1099
  %v1101 = vpop.f32.mrf.mxu0
  %v1102 = vpop.f32.mrf.mxu0
  %v1103 = vadd.f32 %v835, %v1102
  %v1104 = vpop.f32.mrf.mxu0
  %1105 = vmatprep.mubr.bf16.mxu0 %v1002
  %1106 = vmatmul.mubr.bf16.gmra.mxu0 %v1001
  %v1107 = vpop.f32.mrf.mxu0
  %v1108 = vadd.f32 %v840, %v1107
  %v1109 = vpop.f32.mrf.mxu0
  %v1110 = vpop.f32.mrf.mxu0
  %v1111 = vadd.f32 %v845, %v1110
  %v1112 = vpop.f32.mrf.mxu0
  %1113 = vmatprep.mubr.bf16.mxu0 %v1006
  %1114 = vmatmul.mubr.bf16.gmra.mxu0 %v1005
  %v1115 = vpop.f32.mrf.mxu0
  %v1116 = vadd.f32 %v850, %v1115
  %v1117 = vpop.f32.mrf.mxu0
  %v1118 = vpop.f32.mrf.mxu0
  %v1119 = vadd.f32 %v855, %v1118
  %v1120 = vpop.f32.mrf.mxu0
  %1121 = vmatprep.mubr.bf16.mxu0 %v1010
  %1122 = vmatmul.mubr.bf16.gmra.mxu0 %v1009
  %v1123 = vpop.f32.mrf.mxu0
  %v1124 = vadd.f32 %v860, %v1123
  %v1125 = vpop.f32.mrf.mxu0
  %v1126 = vpop.f32.mrf.mxu0
  %v1127 = vadd.f32 %v865, %v1126
  %v1128 = vpop.f32.mrf.mxu0
  %1129 = vmatprep.mubr.bf16.mxu0 %v1014
  %1130 = vmatmul.mubr.bf16.gmra.mxu0 %v1013
  %v1131 = vpop.f32.mrf.mxu0
  %v1132 = vadd.f32 %v870, %v1131
  %v1133 = vpop.f32.mrf.mxu0
  %v1134 = vpop.f32.mrf.mxu0
  %v1135 = vadd.f32 %v875, %v1134
  %v1136 = vpop.f32.mrf.mxu0
  %1137 = vmatprep.mubr.bf16.mxu0 %v1018
  %1138 = vmatmul.mubr.bf16.gmra.mxu0 %v1017
  %v1139 = vpop.f32.mrf.mxu0
  %v1140 = vadd.f32 %v880, %v1139
  %v1141 = vpop.f32.mrf.mxu0
  %v1142 = vpop.f32.mrf.mxu0
  %v1143 = vadd.f32 %v885, %v1142
  %v1144 = vpop.f32.mrf.mxu0
  %1145 = vmatprep.mubr.bf16.mxu0 %v1022
  %1146 = vmatmul.mubr.bf16.gmra.mxu0 %v1021
  %v1147 = vpop.f32.mrf.mxu0
  %v1148 = vadd.f32 %v890, %v1147
  %v1149 = vpop.f32.mrf.mxu0
  %v1150 = vpop.f32.mrf.mxu0
  %v1151 = vadd.f32 %v895, %v1150
  %v1152 = vpop.f32.mrf.mxu0
  %1153 = vdwg.mxu0
  %1154 = vmatprep.subr.bf16.mxu0 0
  %1155 = vmatpush1.bf16.msra.mxu0 %v760
  %1156 = vmatprep.subr.bf16.mxu0 0
  %1157 = vmatpush1.bf16.msra.mxu0 %v759
  %1158 = vmatprep.subr.bf16.mxu0 0
  %1159 = vmatpush1.bf16.msra.mxu0 %v758
  %1160 = vmatprep.subr.bf16.mxu0 0
  %1161 = vmatpush1.bf16.msra.mxu0 %v757
  %1162 = vmatprep.subr.bf16.mxu0 0
  %1163 = vmatpush1.bf16.msra.mxu0 %v756
  %1164 = vmatprep.subr.bf16.mxu0 0
  %1165 = vmatpush1.bf16.msra.mxu0 %v755
  %1166 = vmatprep.subr.bf16.mxu0 0
  %1167 = vmatpush1.bf16.msra.mxu0 %v754
  %1168 = vmatprep.subr.bf16.mxu0 0
  %1169 = vmatpush1.bf16.msra.mxu0 %v753
  %1170 = vmatprep.subr.bf16.mxu0 0
  %1171 = vmatpush2.bf16.msra.mxu0 %v768
  %1172 = vmatprep.subr.bf16.mxu0 0
  %1173 = vmatpush2.bf16.msra.mxu0 %v767
  %1174 = vmatprep.subr.bf16.mxu0 0
  %1175 = vmatpush2.bf16.msra.mxu0 %v766
  %1176 = vmatprep.subr.bf16.mxu0 0
  %1177 = vmatpush2.bf16.msra.mxu0 %v765
  %1178 = vmatprep.subr.bf16.mxu0 0
  %1179 = vmatpush2.bf16.msra.mxu0 %v764
  %1180 = vmatprep.subr.bf16.mxu0 0
  %1181 = vmatpush2.bf16.msra.mxu0 %v763
  %1182 = vmatprep.subr.bf16.mxu0 0
  %1183 = vmatpush2.bf16.msra.mxu0 %v762
  %1184 = vmatprep.subr.bf16.mxu0 0
  %1185 = vmatpush2.bf16.msra.mxu0 %v761
  %1186 = vmatprep.mubr.bf16.mxu0 %v996
  %1187 = vmatmul.mubr.bf16.gmra.mxu0 %v995
  %v1188 = vpop.f32.mrf.mxu0
  %v1189 = vadd.f32 %v1092, %v1188
  %v1190 = vpop.f32.mrf.mxu0
  %v1191 = vpop.f32.mrf.mxu0
  %v1192 = vadd.f32 %v1095, %v1191
  %v1193 = vpop.f32.mrf.mxu0
  %1194 = vmatprep.mubr.bf16.mxu0 %v1000
  %1195 = vmatmul.mubr.bf16.gmra.mxu0 %v999
  %v1196 = vpop.f32.mrf.mxu0
  %v1197 = vadd.f32 %v1100, %v1196
  %v1198 = vpop.f32.mrf.mxu0
  %v1199 = vpop.f32.mrf.mxu0
  %v1200 = vadd.f32 %v1103, %v1199
  %v1201 = vpop.f32.mrf.mxu0
  %1202 = vmatprep.mubr.bf16.mxu0 %v1004
  %1203 = vmatmul.mubr.bf16.gmra.mxu0 %v1003
  %v1204 = vpop.f32.mrf.mxu0
  %v1205 = vadd.f32 %v1108, %v1204
  %v1206 = vpop.f32.mrf.mxu0
  %v1207 = vpop.f32.mrf.mxu0
  %v1208 = vadd.f32 %v1111, %v1207
  %v1209 = vpop.f32.mrf.mxu0
  %1210 = vmatprep.mubr.bf16.mxu0 %v1008
  %1211 = vmatmul.mubr.bf16.gmra.mxu0 %v1007
  %v1212 = vpop.f32.mrf.mxu0
  %v1213 = vadd.f32 %v1116, %v1212
  %v1214 = vpop.f32.mrf.mxu0
  %v1215 = vpop.f32.mrf.mxu0
  %v1216 = vadd.f32 %v1119, %v1215
  %v1217 = vpop.f32.mrf.mxu0
  %1218 = vmatprep.mubr.bf16.mxu0 %v1012
  %1219 = vmatmul.mubr.bf16.gmra.mxu0 %v1011
  %v1220 = vpop.f32.mrf.mxu0
  %v1221 = vadd.f32 %v1124, %v1220
  %v1222 = vpop.f32.mrf.mxu0
  %v1223 = vpop.f32.mrf.mxu0
  %v1224 = vadd.f32 %v1127, %v1223
  %v1225 = vpop.f32.mrf.mxu0
  %1226 = vmatprep.mubr.bf16.mxu0 %v1016
  %1227 = vmatmul.mubr.bf16.gmra.mxu0 %v1015
  %v1228 = vpop.f32.mrf.mxu0
  %v1229 = vadd.f32 %v1132, %v1228
  %v1230 = vpop.f32.mrf.mxu0
  %v1231 = vpop.f32.mrf.mxu0
  %v1232 = vadd.f32 %v1135, %v1231
  %v1233 = vpop.f32.mrf.mxu0
  %1234 = vmatprep.mubr.bf16.mxu0 %v1020
  %1235 = vmatmul.mubr.bf16.gmra.mxu0 %v1019
  %v1236 = vpop.f32.mrf.mxu0
  %v1237 = vadd.f32 %v1140, %v1236
  %v1238 = vpop.f32.mrf.mxu0
  %v1239 = vpop.f32.mrf.mxu0
  %v1240 = vadd.f32 %v1143, %v1239
  %v1241 = vpop.f32.mrf.mxu0
  %1242 = vmatprep.mubr.bf16.mxu0 %v1024
  %1243 = vmatmul.mubr.bf16.gmra.mxu0 %v1023
  %v1244 = vpop.f32.mrf.mxu0
  %v1245 = vadd.f32 %v1148, %v1244
  %v1246 = vpop.f32.mrf.mxu0
  %v1247 = vpop.f32.mrf.mxu0
  %v1248 = vadd.f32 %v1151, %v1247
  %v1249 = vpop.f32.mrf.mxu0
  %1250 = vdwg.mxu0
  %v1251 = vmax.f32 %v1189, 0.0
  %v1252 = vmax.f32 %v1192, 0.0
  %v1253 = vmax.f32 %v1197, 0.0
  %v1254 = vmax.f32 %v1200, 0.0
  %v1255 = vmax.f32 %v1205, 0.0
  %v1256 = vmax.f32 %v1208, 0.0
  %v1257 = vmax.f32 %v1213, 0.0
  %v1258 = vmax.f32 %v1216, 0.0
  %v1259 = vmax.f32 %v1221, 0.0
  %v1260 = vmax.f32 %v1224, 0.0
  %v1261 = vmax.f32 %v1229, 0.0
  %v1262 = vmax.f32 %v1232, 0.0
  %v1263 = vmax.f32 %v1237, 0.0
  %v1264 = vmax.f32 %v1240, 0.0
  %v1265 = vmax.f32 %v1245, 0.0
  %v1266 = vmax.f32 %v1248, 0.0
  %v1267 = vpack.c.bf16 %v1252, %v1251
  %v1268 = vpack.c.bf16 %v1254, %v1253
  %v1269 = vpack.c.bf16 %v1256, %v1255
  %v1270 = vpack.c.bf16 %v1258, %v1257
  %v1271 = vpack.c.bf16 %v1260, %v1259
  %v1272 = vpack.c.bf16 %v1262, %v1261
  %v1273 = vpack.c.bf16 %v1264, %v1263
  %v1274 = vpack.c.bf16 %v1266, %v1265
  %v1275 = vld [vmem:[%s4] sm:$0xf]
  %v1276 = vld [vmem:[%s4 + $0x4] sm:$0xf]
  %v1277 = vld [vmem:[%s4 + $0x8] sm:$0xf]
  %v1278 = vld [vmem:[%s4 + $0xc] sm:$0xf]
  %v1279 = vld [vmem:[%s4 + $0x10] sm:$0xf]
  %v1280 = vld [vmem:[%s4 + $0x14] sm:$0xf]
  %v1281 = vld [vmem:[%s4 + $0x18] sm:$0xf]
  %v1282 = vld [vmem:[%s4 + $0x1c] sm:$0xf]
  %v1283 = vld [vmem:[%s4 + $0x20] sm:$0xf]
  %v1284 = vld [vmem:[%s4 + $0x24] sm:$0xf]
  %v1285 = vld [vmem:[%s4 + $0x28] sm:$0xf]
  %v1286 = vld [vmem:[%s4 + $0x2c] sm:$0xf]
  %v1287 = vld [vmem:[%s4 + $0x30] sm:$0xf]
  %v1288 = vld [vmem:[%s4 + $0x34] sm:$0xf]
  %v1289 = vld [vmem:[%s4 + $0x38] sm:$0xf]
  %v1290 = vld [vmem:[%s4 + $0x3c] sm:$0xf]
  %v1291 = vld [vmem:[%s5] sm:$0xff]
  %v1292 = vld [vmem:[%s5 + $0x8] sm:$0xff]
  %v1293 = vld [vmem:[%s5 + $0x10] sm:$0xff]
  %v1294 = vld [vmem:[%s5 + $0x18] sm:$0xff]
  %v1295 = vld [vmem:[%s5 + $0x20] sm:$0xff]
  %v1296 = vld [vmem:[%s5 + $0x28] sm:$0xff]
  %v1297 = vld [vmem:[%s5 + $0x30] sm:$0xff]
  %v1298 = vld [vmem:[%s5 + $0x38] sm:$0xff]
  %v1299 = vld [vmem:[%s5 + $0x40] sm:$0xff]
  %v1300 = vld [vmem:[%s5 + $0x48] sm:$0xff]
  %v1301 = vld [vmem:[%s5 + $0x50] sm:$0xff]
  %v1302 = vld [vmem:[%s5 + $0x58] sm:$0xff]
  %v1303 = vld [vmem:[%s5 + $0x60] sm:$0xff]
  %v1304 = vld [vmem:[%s5 + $0x68] sm:$0xff]
  %v1305 = vld [vmem:[%s5 + $0x70] sm:$0xff]
  %v1306 = vld [vmem:[%s5 + $0x78] sm:$0xff]
  %1308 = vset.pattern.permute.xlu0 0
  %1309 = vperm.xlu0 %1308, %v1291
  %v1310 = vpop.permute.xlu0 %1309
  %1313 = vset.pattern.permute.xlu0 0
  %1314 = vperm.xlu0 %1313, %v1292
  %v1315 = vpop.permute.xlu0 %1314
  %1318 = vset.pattern.permute.xlu0 0
  %1319 = vperm.xlu0 %1318, %v1293
  %v1320 = vpop.permute.xlu0 %1319
  %1323 = vset.pattern.permute.xlu0 0
  %1324 = vperm.xlu0 %1323, %v1294
  %v1325 = vpop.permute.xlu0 %1324
  %1328 = vset.pattern.permute.xlu0 0
  %1329 = vperm.xlu0 %1328, %v1295
  %v1330 = vpop.permute.xlu0 %1329
  %1333 = vset.pattern.permute.xlu0 0
  %1334 = vperm.xlu0 %1333, %v1296
  %v1335 = vpop.permute.xlu0 %1334
  %1338 = vset.pattern.permute.xlu0 0
  %1339 = vperm.xlu0 %1338, %v1297
  %v1340 = vpop.permute.xlu0 %1339
  %1343 = vset.pattern.permute.xlu0 0
  %1344 = vperm.xlu0 %1343, %v1298
  %v1345 = vpop.permute.xlu0 %1344
  %1348 = vset.pattern.permute.xlu0 0
  %1349 = vperm.xlu0 %1348, %v1299
  %v1350 = vpop.permute.xlu0 %1349
  %1353 = vset.pattern.permute.xlu0 0
  %1354 = vperm.xlu0 %1353, %v1300
  %v1355 = vpop.permute.xlu0 %1354
  %1358 = vset.pattern.permute.xlu0 0
  %1359 = vperm.xlu0 %1358, %v1301
  %v1360 = vpop.permute.xlu0 %1359
  %1363 = vset.pattern.permute.xlu0 0
  %1364 = vperm.xlu0 %1363, %v1302
  %v1365 = vpop.permute.xlu0 %1364
  %1368 = vset.pattern.permute.xlu0 0
  %1369 = vperm.xlu0 %1368, %v1303
  %v1370 = vpop.permute.xlu0 %1369
  %1373 = vset.pattern.permute.xlu0 0
  %1374 = vperm.xlu0 %1373, %v1304
  %v1375 = vpop.permute.xlu0 %1374
  %1378 = vset.pattern.permute.xlu0 0
  %1379 = vperm.xlu0 %1378, %v1305
  %v1380 = vpop.permute.xlu0 %1379
  %1383 = vset.pattern.permute.xlu0 0
  %1384 = vperm.xlu0 %1383, %v1306
  %v1385 = vpop.permute.xlu0 %1384
  %v1403 = vunpack.c.l.b16 %v1275
  %v1404 = vunpack.c.l.b16 %v1276
  %v1405 = vunpack.c.l.b16 %v1277
  %v1406 = vunpack.c.l.b16 %v1278
  %v1407 = vunpack.c.l.b16 %v1279
  %v1408 = vunpack.c.l.b16 %v1280
  %v1409 = vunpack.c.l.b16 %v1281
  %v1410 = vunpack.c.l.b16 %v1282
  %v1411 = vunpack.c.l.b16 %v1283
  %v1412 = vunpack.c.l.b16 %v1284
  %v1413 = vunpack.c.l.b16 %v1285
  %v1414 = vunpack.c.l.b16 %v1286
  %v1415 = vunpack.c.l.b16 %v1287
  %v1416 = vunpack.c.l.b16 %v1288
  %v1417 = vunpack.c.l.b16 %v1289
  %v1418 = vunpack.c.l.b16 %v1290
  %v1419 = vpack.c.b16 %v1404, %v1403
  %v1420 = vpack.c.b16 %v1406, %v1405
  %v1421 = vpack.c.b16 %v1408, %v1407
  %v1422 = vpack.c.b16 %v1410, %v1409
  %v1423 = vpack.c.b16 %v1412, %v1411
  %v1424 = vpack.c.b16 %v1414, %v1413
  %v1425 = vpack.c.b16 %v1416, %v1415
  %v1426 = vpack.c.b16 %v1418, %v1417
  %1435 = vmatprep.subr.bf16.mxu0 0
  %1436 = vmatpush1.bf16.msra.mxu0 %v1274
  %1437 = vmatprep.subr.bf16.mxu0 0
  %1438 = vmatpush1.bf16.msra.mxu0 %v1273
  %1439 = vmatprep.subr.bf16.mxu0 0
  %1440 = vmatpush1.bf16.msra.mxu0 %v1272
  %1441 = vmatprep.subr.bf16.mxu0 0
  %1442 = vmatpush1.bf16.msra.mxu0 %v1271
  %1443 = vmatprep.subr.bf16.mxu0 0
  %1444 = vmatpush1.bf16.msra.mxu0 %v1270
  %1445 = vmatprep.subr.bf16.mxu0 0
  %1446 = vmatpush1.bf16.msra.mxu0 %v1269
  %1447 = vmatprep.subr.bf16.mxu0 0
  %1448 = vmatpush1.bf16.msra.mxu0 %v1268
  %1449 = vmatprep.subr.bf16.mxu0 0
  %1450 = vmatpush1.bf16.msra.mxu0 %v1267
  %1451 = vmatprep.subr.bf16.mxu0 0
  %1452 = vmatpush2.bf16.msra.mxu0 0
  %1453 = vmatprep.subr.bf16.mxu0 0
  %1454 = vmatpush2.bf16.msra.mxu0 0
  %1455 = vmatprep.subr.bf16.mxu0 0
  %1456 = vmatpush2.bf16.msra.mxu0 0
  %1457 = vmatprep.subr.bf16.mxu0 0
  %1458 = vmatpush2.bf16.msra.mxu0 0
  %1459 = vmatprep.subr.bf16.mxu0 0
  %1460 = vmatpush2.bf16.msra.mxu0 0
  %1461 = vmatprep.subr.bf16.mxu0 0
  %1462 = vmatpush2.bf16.msra.mxu0 0
  %1463 = vmatprep.subr.bf16.mxu0 0
  %1464 = vmatpush2.bf16.msra.mxu0 0
  %1465 = vmatprep.subr.bf16.mxu0 0
  %1466 = vmatpush2.bf16.msra.mxu0 0
  %1467 = vmatprep.mubr.bf16.mxu0 0
  %1468 = vmatmul.mubr.bf16.gmra.mxu0 %v1419
  %v1469 = vpop.f32.mrf.mxu0
  %v1470 = vadd.f32 %v1310, %v1469
  %v1471 = vpop.f32.mrf.mxu0
  %v1472 = vpop.f32.mrf.mxu0
  %v1473 = vadd.f32 %v1315, %v1472
  %v1474 = vpop.f32.mrf.mxu0
  %1475 = vmatprep.mubr.bf16.mxu0 0
  %1476 = vmatmul.mubr.bf16.gmra.mxu0 %v1420
  %v1477 = vpop.f32.mrf.mxu0
  %v1478 = vadd.f32 %v1320, %v1477
  %v1479 = vpop.f32.mrf.mxu0
  %v1480 = vpop.f32.mrf.mxu0
  %v1481 = vadd.f32 %v1325, %v1480
  %v1482 = vpop.f32.mrf.mxu0
  %1483 = vmatprep.mubr.bf16.mxu0 0
  %1484 = vmatmul.mubr.bf16.gmra.mxu0 %v1421
  %v1485 = vpop.f32.mrf.mxu0
  %v1486 = vadd.f32 %v1330, %v1485
  %v1487 = vpop.f32.mrf.mxu0
  %v1488 = vpop.f32.mrf.mxu0
  %v1489 = vadd.f32 %v1335, %v1488
  %v1490 = vpop.f32.mrf.mxu0
  %1491 = vmatprep.mubr.bf16.mxu0 0
  %1492 = vmatmul.mubr.bf16.gmra.mxu0 %v1422
  %v1493 = vpop.f32.mrf.mxu0
  %v1494 = vadd.f32 %v1340, %v1493
  %v1495 = vpop.f32.mrf.mxu0
  %v1496 = vpop.f32.mrf.mxu0
  %v1497 = vadd.f32 %v1345, %v1496
  %v1498 = vpop.f32.mrf.mxu0
  %1499 = vmatprep.mubr.bf16.mxu0 0
  %1500 = vmatmul.mubr.bf16.gmra.mxu0 %v1423
  %v1501 = vpop.f32.mrf.mxu0
  %v1502 = vadd.f32 %v1350, %v1501
  %v1503 = vpop.f32.mrf.mxu0
  %v1504 = vpop.f32.mrf.mxu0
  %v1505 = vadd.f32 %v1355, %v1504
  %v1506 = vpop.f32.mrf.mxu0
  %1507 = vmatprep.mubr.bf16.mxu0 0
  %1508 = vmatmul.mubr.bf16.gmra.mxu0 %v1424
  %v1509 = vpop.f32.mrf.mxu0
  %v1510 = vadd.f32 %v1360, %v1509
  %v1511 = vpop.f32.mrf.mxu0
  %v1512 = vpop.f32.mrf.mxu0
  %v1513 = vadd.f32 %v1365, %v1512
  %v1514 = vpop.f32.mrf.mxu0
  %1515 = vmatprep.mubr.bf16.mxu0 0
  %1516 = vmatmul.mubr.bf16.gmra.mxu0 %v1425
  %v1517 = vpop.f32.mrf.mxu0
  %v1518 = vadd.f32 %v1370, %v1517
  %v1519 = vpop.f32.mrf.mxu0
  %v1520 = vpop.f32.mrf.mxu0
  %v1521 = vadd.f32 %v1375, %v1520
  %v1522 = vpop.f32.mrf.mxu0
  %1523 = vmatprep.mubr.bf16.mxu0 0
  %1524 = vmatmul.mubr.bf16.gmra.mxu0 %v1426
  %v1525 = vpop.f32.mrf.mxu0
  %v1526 = vadd.f32 %v1380, %v1525
  %v1527 = vpop.f32.mrf.mxu0
  %v1528 = vpop.f32.mrf.mxu0
  %v1529 = vadd.f32 %v1385, %v1528
  %v1530 = vpop.f32.mrf.mxu0
  %1531 = vdwg.mxu0
  %v1532 = vmax.f32 %v1470, 0.0
  %v1533 = vmax.f32 %v1473, 0.0
  %v1534 = vmax.f32 %v1478, 0.0
  %v1535 = vmax.f32 %v1481, 0.0
  %v1536 = vmax.f32 %v1486, 0.0
  %v1537 = vmax.f32 %v1489, 0.0
  %v1538 = vmax.f32 %v1494, 0.0
  %v1539 = vmax.f32 %v1497, 0.0
  %v1540 = vmax.f32 %v1502, 0.0
  %v1541 = vmax.f32 %v1505, 0.0
  %v1542 = vmax.f32 %v1510, 0.0
  %v1543 = vmax.f32 %v1513, 0.0
  %v1544 = vmax.f32 %v1518, 0.0
  %v1545 = vmax.f32 %v1521, 0.0
  %v1546 = vmax.f32 %v1526, 0.0
  %v1547 = vmax.f32 %v1529, 0.0
  %v1548 = vld [vmem:[%s6] sm:$0xff]
  %v1549 = vld [vmem:[%s7] sm:$0xff]
  %1551 = vset.pattern.permute.xlu0 0
  %1552 = vperm.xlu0 %1551, %v1549
  %v1553 = vpop.permute.xlu0 %1552
  %1555 = vmatprep.subr.mxu0 0.0
  %1556 = vmatpush1.msra.mxu0 %v1547
  %1557 = vmatprep.subr.mxu0 0.0
  %1558 = vmatpush1.msra.mxu0 %v1546
  %1559 = vmatprep.subr.mxu0 0.0
  %1560 = vmatpush1.msra.mxu0 %v1545
  %1561 = vmatprep.subr.mxu0 0.0
  %1562 = vmatpush1.msra.mxu0 %v1544
  %1563 = vmatprep.subr.mxu0 0.0
  %1564 = vmatpush1.msra.mxu0 %v1543
  %1565 = vmatprep.subr.mxu0 0.0
  %1566 = vmatpush1.msra.mxu0 %v1542
  %1567 = vmatprep.subr.mxu0 0.0
  %1568 = vmatpush1.msra.mxu0 %v1541
  %1569 = vmatprep.subr.mxu0 0.0
  %1570 = vmatpush1.msra.mxu0 %v1540
  %1571 = vmatprep.subr.mxu0 0.0
  %1572 = vmatpush1.msra.mxu0 %v1539
  %1573 = vmatprep.subr.mxu0 0.0
  %1574 = vmatpush1.msra.mxu0 %v1538
  %1575 = vmatprep.subr.mxu0 0.0
  %1576 = vmatpush1.msra.mxu0 %v1537
  %1577 = vmatprep.subr.mxu0 0.0
  %1578 = vmatpush1.msra.mxu0 %v1536
  %1579 = vmatprep.subr.mxu0 0.0
  %1580 = vmatpush1.msra.mxu0 %v1535
  %1581 = vmatprep.subr.mxu0 0.0
  %1582 = vmatpush1.msra.mxu0 %v1534
  %1583 = vmatprep.subr.mxu0 0.0
  %1584 = vmatpush1.msra.mxu0 %v1533
  %1585 = vmatprep.subr.mxu0 0.0
  %1586 = vmatpush1.msra.mxu0 %v1532
  %1587 = vmatprep.subr.mxu0 0.0
  %1588 = vmatpush2.msra.mxu0 0.0
  %1589 = vmatprep.subr.mxu0 0.0
  %1590 = vmatpush2.msra.mxu0 0.0
  %1591 = vmatprep.subr.mxu0 0.0
  %1592 = vmatpush2.msra.mxu0 0.0
  %1593 = vmatprep.subr.mxu0 0.0
  %1594 = vmatpush2.msra.mxu0 0.0
  %1595 = vmatprep.subr.mxu0 0.0
  %1596 = vmatpush2.msra.mxu0 0.0
  %1597 = vmatprep.subr.mxu0 0.0
  %1598 = vmatpush2.msra.mxu0 0.0
  %1599 = vmatprep.subr.mxu0 0.0
  %1600 = vmatpush2.msra.mxu0 0.0
  %1601 = vmatprep.subr.mxu0 0.0
  %1602 = vmatpush2.msra.mxu0 0.0
  %1603 = vmatprep.subr.mxu0 0.0
  %1604 = vmatpush2.msra.mxu0 0.0
  %1605 = vmatprep.subr.mxu0 0.0
  %1606 = vmatpush2.msra.mxu0 0.0
  %1607 = vmatprep.subr.mxu0 0.0
  %1608 = vmatpush2.msra.mxu0 0.0
  %1609 = vmatprep.subr.mxu0 0.0
  %1610 = vmatpush2.msra.mxu0 0.0
  %1611 = vmatprep.subr.mxu0 0.0
  %1612 = vmatpush2.msra.mxu0 0.0
  %1613 = vmatprep.subr.mxu0 0.0
  %1614 = vmatpush2.msra.mxu0 0.0
  %1615 = vmatprep.subr.mxu0 0.0
  %1616 = vmatpush2.msra.mxu0 0.0
  %1617 = vmatprep.subr.mxu0 0.0
  %1618 = vmatpush2.msra.mxu0 0.0
  %1619 = vmatprep.mubr.f32.mxu0 0.0
  %1620 = vmatmul.mubr.f32.gmra.mxu0 %v1548
  %v1621 = vpop.f32.mrf.mxu0
  %v1622 = vadd.f32 %v1553, %v1621
  %v1623 = vpop.f32.mrf.mxu0
  %1624 = vdwg.mxu0
  %1625 = vst [vmem:[%s8] sm:$0xff] %v1622
  // Predicated region
  $region34: #{sound_source_model.1} parent=0 // pred_check
    _
  $region35: #{sound_source_model.1} parent=0 // pred_check_branch
    %1627 = sbr.rel (0) target = $region37
  $region36: #{sound_source_model.1} parent=0 // pred_region
    _
  $region37: #{sound_source_model.1} parent=0 // pred_fallthru
    _
  // Predicated region
  $region38: #{sound_source_model.1} parent=0 // pred_check
    _
  $region39: #{sound_source_model.1} parent=0 // pred_check_branch
    %1629 = sbr.rel (0) target = $region41
  $region40: #{sound_source_model.1} parent=0 // pred_region
    _
  $region41: #{sound_source_model.1} parent=0 // pred_fallthru
    _

</llo_original>
